<compile_context>
chip_gen: v6e
topology: v6e:2x2x1
jax: 0.10.0
libtpu: 0.0.40
codegen_flags: <defaults>
</compile_context>

<pallas_src>
import numpy as np
import jax
import jax.numpy as jnp
from jax.experimental import pallas as pl
from jax.experimental.pallas import tpu as pltpu

# ---------------- small synthetic configuration ----------------
B = 2                          # logical batch
B_PAD = 8                      # batch padded to a full sublane group inside the kernel
CIN = 3                        # RGB input channels
H = W = 16                     # spatial size (stand-in for FINAL_RES=(192,72))
PATCH = 4                      # patchify kernel = stride
C = 32                         # backbone feature maps (stand-in for convnext-base 1024)
HP, WP = H // PATCH, W // PATCH
HW = HP * WP                   # flattened feature-map spatial size (16)
CBAM_R = 4                     # channel-attention reduction ratio
CR = C // CBAM_R
NUM_CLASSES = 5
MLP_H1, MLP_H2 = 128, 64
FLAT = C * HW                  # flattened feature size fed to the MLP head (512)
K_RAW = CIN * PATCH * PATCH    # 48
K_PAD = 64                     # im2col K zero-padded to a tile-friendly size
OUT_PAD = 128                  # lane-dense logits block; sliced to NUM_CLASSES outside

# bias-slab row layout (one (8,128) f32 operand instead of seven 1-row operands)
ROW_STEM_B, ROW_LN_G, ROW_LN_B, ROW_B1, ROW_B2, ROW_B3, ROW_SA_B = 0, 1, 2, 3, 4, 5, 6


# ---------------- the single fused Pallas kernel ----------------
def anetwork_kernel(p_ref, sw_ref, bias_ref, cw1_ref, cw2_ref, sa_ref,
                    w1_ref, w2_ref, w3_ref, o_ref, flat_ref):
    f32, bf16 = jnp.float32, jnp.bfloat16

    bias = bias_ref[...]                               # (8, 128) f32, one load
    stem_b = bias[ROW_STEM_B:ROW_STEM_B + 1, :C]
    ln_g = bias[ROW_LN_G:ROW_LN_G + 1, :C]
    ln_b = bias[ROW_LN_B:ROW_LN_B + 1, :C]
    b1 = bias[ROW_B1:ROW_B1 + 1, :MLP_H1]
    b2 = bias[ROW_B2:ROW_B2 + 1, :MLP_H2]
    b3 = bias[ROW_B3:ROW_B3 + 1, :]
    sa_b = bias[ROW_SA_B:ROW_SA_B + 1, 0:1]

    # ---- backbone stem: patchify conv (im2col matmul, padded K) + channel LayerNorm ----
    y = jnp.dot(p_ref[...], sw_ref[...], preferred_element_type=f32) + stem_b  # (B_PAD*HW, C)
    mu = jnp.mean(y, axis=-1, keepdims=True)
    var = jnp.mean(jnp.square(y - mu), axis=-1, keepdims=True)
    feat = (y - mu) * jax.lax.rsqrt(var + 1e-6) * ln_g + ln_b
    f3 = feat.reshape(B_PAD, HW, C)                    # major-dim split only (cheap)

    # ---- CBAM channel attention: shared MLP, one pass on the sublane-stacked [avg; max] ----
    avg_c = jnp.mean(f3, axis=1)                       # (B_PAD, C)
    max_c = jnp.max(f3, axis=1)                        # (B_PAD, C)
    pooled = jnp.concatenate([avg_c, max_c], axis=0)   # (2*B_PAD, C), aligned sublane concat
    hcm = jnp.maximum(
        jnp.dot(pooled.astype(bf16), cw1_ref[...], preferred_element_type=f32), 0.0)
    # MLP(avg)+MLP(max) == (relu(avg@W1)+relu(max@W1)) @ W2   (second layer is linear)
    hsum = hcm[:B_PAD] + hcm[B_PAD:]                   # (B_PAD, CR)
    ca = jax.nn.sigmoid(
        jnp.dot(hsum.astype(bf16), cw2_ref[...], preferred_element_type=f32))  # (B_PAD, C)
    fc = f3 * ca[:, None, :]                           # (B_PAD, HW, C)

    # ---- CBAM spatial attention: 7x7 conv folded into one dense (HW, 2*HW) operator ----
    avg_s = jnp.mean(fc, axis=2)                       # (B_PAD, HW)
    max_s = jnp.max(fc, axis=2)                        # (B_PAD, HW)
    pooled_s = jnp.concatenate([avg_s, max_s], axis=0)  # (2*B_PAD, HW)
    r = jnp.dot(pooled_s.astype(bf16), sa_ref[...],
                preferred_element_type=f32)            # (2*B_PAD, 2*HW)
    logit = r[:B_PAD, :HW] + r[B_PAD:, HW:] + sa_b     # avg-part + max-part + conv bias
    sa = jax.nn.sigmoid(logit)                         # (B_PAD, HW)
    att = fc * sa[:, :, None]                          # (B_PAD, HW, C) f32

    # ---- head: flatten via VMEM scratch (h-major rows), then ONE K=FLAT dot + 2-layer MLP ----
    for hh in range(HW):                               # 16 independent static-slice stores
        flat_ref[:, hh * C:(hh + 1) * C] = att[:, hh, :]
    h1 = jnp.maximum(
        jnp.dot(flat_ref[...].astype(bf16), w1_ref[...], preferred_element_type=f32) + b1,
        0.0)
    h2 = jnp.maximum(
        jnp.dot(h1.astype(bf16), w2_ref[...], preferred_element_type=f32) + b2, 0.0)
    # lane-dense (B_PAD, 128) logits block; valid classes live in the first NUM_CLASSES lanes
    o_ref[...] = jnp.dot(h2.astype(bf16), w3_ref[...], preferred_element_type=f32) + b3


def anetwork_call(patches, p):
    operands = (patches, p["stem_w"], p["bias_slab"], p["ca_w1"], p["ca_w2"],
                p["sa_w"], p["mlp_w1"], p["mlp_w2"], p["mlp_w3"])
    flops = (2 * B_PAD * HW * K_PAD * C
             + 2 * (2 * B_PAD) * C * CR + 2 * B_PAD * CR * C
             + 2 * (2 * B_PAD) * HW * (2 * HW)
             + 2 * B_PAD * FLAT * MLP_H1
             + 2 * B_PAD * MLP_H1 * MLP_H2
             + 2 * B_PAD * MLP_H2 * OUT_PAD)
    bytes_accessed = (sum(int(np.prod(a.shape)) * a.dtype.itemsize for a in operands)
                      + B_PAD * OUT_PAD * 4)
    # Everything (weights + activations) is well under 1 MiB -> whole net in one grid-less
    # pallas_call, fully VMEM-resident on every generation (incl. v7x's 64 MiB VMEM).
    return pl.pallas_call(
        anetwork_kernel,
        out_shape=jax.ShapeDtypeStruct((B_PAD, OUT_PAD), jnp.float32),
        scratch_shapes=[pltpu.VMEM((B_PAD, FLAT), jnp.float32)],
        cost_estimate=pl.CostEstimate(flops=flops, transcendentals=B_PAD * (C + 2 * HW),
                                      bytes_accessed=bytes_accessed),
    )(*operands)


# ---------------- host-side glue ----------------
def patchify(x):
    # x: (B, CIN, H, W) NCHW -> im2col rows flattened in (cin, ph, pw) order;
    # K zero-padded 48->64, batch zero-padded to B_PAD (rows are independent, sliced outside).
    xb = x.reshape(B, CIN, HP, PATCH, WP, PATCH)
    xb = jnp.transpose(xb, (0, 2, 4, 1, 3, 5))             # (B, HP, WP, CIN, ph, pw)
    pch = xb.reshape(B * HW, K_RAW)
    pch = jnp.pad(pch, ((0, (B_PAD - B) * HW), (0, K_PAD - K_RAW)))
    return pch.astype(jnp.bfloat16)


def build_spatial_conv_operators(kw):
    """Turn the CBAM 7x7 spatial conv (2->1 channels, padding=3) into two dense (HW, HW)
    operators stored [input_pos, output_pos] so they right-multiply the (B, HW) pooled maps.
    Valid only for the fixed HPxWP built here."""
    s_avg_t = np.zeros((HW, HW), np.float32)
    s_max_t = np.zeros((HW, HW), np.float32)
    for oy in range(HP):
        for ox in range(WP):
            o = oy * WP + ox
            for ky in range(7):
                for kx in range(7):
                    iy, ix = oy + ky - 3, ox + kx - 3
                    if 0 <= iy < HP and 0 <= ix < WP:
                        i = iy * WP + ix
                        s_avg_t[i, o] += kw[0, ky, kx]
                        s_max_t[i, o] += kw[1, ky, kx]
    return s_avg_t, s_max_t


def init_params(key):
    ks = jax.random.split(key, 8)
    f32, bf16 = jnp.float32, jnp.bfloat16
    p = {}
    # backbone stem: Conv2d(CIN, C, 4, stride=4) + LayerNorm(C)
    stem_w = jax.random.normal(ks[0], (C, CIN, PATCH, PATCH), f32) * 0.1
    stem_w = stem_w.reshape(C, K_RAW).T                                   # (K_RAW, C)
    p["stem_w"] = jnp.pad(stem_w, ((0, K_PAD - K_RAW), (0, 0))).astype(bf16)
    stem_b = np.asarray(jax.random.normal(ks[1], (C,), f32) * 0.01)
    # CBAM channel-attention shared MLP (no bias, as in the reference CBAM)
    p["ca_w1"] = (jax.random.normal(ks[2], (C, CR), f32) * 0.1).astype(bf16)
    p["ca_w2"] = (jax.random.normal(ks[3], (CR, C), f32) * 0.1).astype(bf16)
    # CBAM spatial-attention 7x7 conv (2->1 channels) as ONE merged dense operator [Sa | Sm]
    sa_kw = np.asarray(jax.random.normal(ks[4], (2, 7, 7), f32) * 0.1)
    s_avg_t, s_max_t = build_spatial_conv_operators(sa_kw)
    p["sa_w"] = jnp.asarray(np.concatenate([s_avg_t, s_max_t], axis=1)).astype(bf16)  # (HW,2HW)
    # MLP classifier head; fold the PyTorch NCHW flatten (c-major rows) into w1's row order:
    # w1_pt[(c*HW + h), m]  ->  mlp_w1[(h*C + c), m]   (matches the h-major in-kernel flatten)
    w1_pt = jax.random.normal(ks[5], (FLAT, MLP_H1), f32) / np.sqrt(FLAT)
    w1_hw = jnp.transpose(w1_pt.reshape(C, HW, MLP_H1), (1, 0, 2)).reshape(FLAT, MLP_H1)
    p["mlp_w1"] = w1_hw.astype(bf16)
    p["mlp_w2"] = (jax.random.normal(ks[6], (MLP_H1, MLP_H2), f32)
                   / np.sqrt(MLP_H1)).astype(bf16)
    w3 = jax.random.normal(ks[7], (MLP_H2, NUM_CLASSES), f32) / np.sqrt(MLP_H2)
    p["mlp_w3"] = jnp.pad(w3, ((0, 0), (0, OUT_PAD - NUM_CLASSES))).astype(bf16)
    # packed (8,128) f32 slab: stem bias, LN gamma/beta, MLP biases, spatial-conv bias
    slab = np.zeros((8, OUT_PAD), np.float32)
    slab[ROW_STEM_B, :C] = stem_b
    slab[ROW_LN_G, :C] = 1.0           # LayerNorm gamma
    slab[ROW_LN_B, :C] = 0.0           # LayerNorm beta
    slab[ROW_B1, :MLP_H1] = 0.0        # MLP biases (zero-init, as before)
    slab[ROW_B2, :MLP_H2] = 0.0
    slab[ROW_B3, :] = 0.0              # (already padded to OUT_PAD)
    slab[ROW_SA_B, 0] = 0.0            # spatial-attention conv bias
    p["bias_slab"] = jnp.asarray(slab)
    return p


@jax.jit
def anetwork_forward(x, params):
    # backbone im2col (tiny, trace-time layout glue in XLA), then one fused Pallas kernel.
    patches = patchify(x)
    logits_padded = anetwork_call(patches, params)          # (B_PAD, 128) lane-dense
    out = logits_padded[:B, :NUM_CLASSES]
    # forward(): a 1-D output would be unsqueezed; here it is already (B, num_classes)
    return out


if __name__ == "__main__":
    key = jax.random.PRNGKey(0)
    pkey, xkey = jax.random.split(key)
    params = init_params(pkey)
    x = jax.random.normal(xkey, (B, CIN, H, W), jnp.float32)   # NCHW, like PyTorch
    out = jax.block_until_ready(anetwork_forward(x, params))
    assert out.shape == (B, NUM_CLASSES), out.shape
    assert bool(jnp.all(jnp.isfinite(out)))
    print("KERNEL_OK")
</pallas_src>

<mosaic_0001>
module attributes {stable_mosaic.version = 11 : i64} {
  func.func @anetwork_kernel(%arg0: memref<128x64xbf16, #tpu.memory_space<vmem>>, %arg1: memref<64x32xbf16, #tpu.memory_space<vmem>>, %arg2: memref<8x128xf32, #tpu.memory_space<vmem>>, %arg3: memref<32x8xbf16, #tpu.memory_space<vmem>>, %arg4: memref<8x32xbf16, #tpu.memory_space<vmem>>, %arg5: memref<16x32xbf16, #tpu.memory_space<vmem>>, %arg6: memref<512x128xbf16, #tpu.memory_space<vmem>>, %arg7: memref<128x64xbf16, #tpu.memory_space<vmem>>, %arg8: memref<64x128xbf16, #tpu.memory_space<vmem>>, %arg9: memref<8x128xf32, #tpu.memory_space<vmem>>, %arg10: memref<8x512xf32, #tpu.memory_space<vmem>>) attributes {dimension_semantics = [], scalar_prefetch = 0 : i64, scratch_operands = 1 : i64, tpu.core_type = #tpu.core_type<tc>} {
    %c0 = arith.constant 0 : index
    %c0_0 = arith.constant 0 : index
    %0 = vector.load %arg2[%c0, %c0_0] : memref<8x128xf32, #tpu.memory_space<vmem>>, vector<8x128xf32>
    %1 = vector.extract_strided_slice %0 {offsets = [0, 0], sizes = [1, 32], strides = [1, 1]} : vector<8x128xf32> to vector<1x32xf32>
    %2 = vector.extract_strided_slice %0 {offsets = [1, 0], sizes = [1, 32], strides = [1, 1]} : vector<8x128xf32> to vector<1x32xf32>
    %3 = vector.extract_strided_slice %0 {offsets = [2, 0], sizes = [1, 32], strides = [1, 1]} : vector<8x128xf32> to vector<1x32xf32>
    %4 = vector.extract_strided_slice %0 {offsets = [3, 0], sizes = [1, 128], strides = [1, 1]} : vector<8x128xf32> to vector<1x128xf32>
    %5 = vector.extract_strided_slice %0 {offsets = [4, 0], sizes = [1, 64], strides = [1, 1]} : vector<8x128xf32> to vector<1x64xf32>
    %6 = vector.extract_strided_slice %0 {offsets = [5, 0], sizes = [1, 128], strides = [1, 1]} : vector<8x128xf32> to vector<1x128xf32>
    %7 = vector.extract_strided_slice %0 {offsets = [6, 0], sizes = [1, 1], strides = [1, 1]} : vector<8x128xf32> to vector<1x1xf32>
    %c0_1 = arith.constant 0 : index
    %c0_2 = arith.constant 0 : index
    %8 = vector.load %arg0[%c0_1, %c0_2] : memref<128x64xbf16, #tpu.memory_space<vmem>>, vector<128x64xbf16>
    %c0_3 = arith.constant 0 : index
    %c0_4 = arith.constant 0 : index
    %9 = vector.load %arg1[%c0_3, %c0_4] : memref<64x32xbf16, #tpu.memory_space<vmem>>, vector<64x32xbf16>
    %cst = arith.constant dense<0.000000e+00> : vector<128x32xf32>
    %10 = tpu.matmul %8, %9, %cst {dimension_numbers = #tpu.dot_dimension_numbers<[1], [0], [0], [1], [0, 0, 1, 1], [], []>} : vector<128x64xbf16>, vector<64x32xbf16>, vector<128x32xf32> -> vector<128x32xf32>
    %11 = vector.broadcast %1 : vector<1x32xf32> to vector<128x32xf32>
    %12 = arith.addf %10, %11 : vector<128x32xf32>
    %cst_5 = arith.constant dense<0.000000e+00> : vector<128xf32>
    %13 = vector.multi_reduction <add>, %12, %cst_5 [1] : vector<128x32xf32> to vector<128xf32>
    %14 = vector.shape_cast %13 : vector<128xf32> to vector<128x1xf32>
    %cst_6 = arith.constant 3.200000e+01 : f32
    %15 = vector.broadcast %cst_6 : f32 to vector<128x1xf32>
    %16 = arith.divf %14, %15 : vector<128x1xf32>
    %17 = vector.broadcast %16 : vector<128x1xf32> to vector<128x32xf32>
    %18 = arith.subf %12, %17 : vector<128x32xf32>
    %19 = arith.mulf %18, %18 : vector<128x32xf32>
    %cst_7 = arith.constant dense<0.000000e+00> : vector<128xf32>
    %20 = vector.multi_reduction <add>, %19, %cst_7 [1] : vector<128x32xf32> to vector<128xf32>
    %21 = vector.shape_cast %20 : vector<128xf32> to vector<128x1xf32>
    %cst_8 = arith.constant 3.200000e+01 : f32
    %22 = vector.broadcast %cst_8 : f32 to vector<128x1xf32>
    %23 = arith.divf %21, %22 : vector<128x1xf32>
    %24 = vector.broadcast %16 : vector<128x1xf32> to vector<128x32xf32>
    %25 = arith.subf %12, %24 : vector<128x32xf32>
    %cst_9 = arith.constant 9.99999997E-7 : f32
    %26 = vector.broadcast %cst_9 : f32 to vector<128x1xf32>
    %27 = arith.addf %23, %26 : vector<128x1xf32>
    %28 = math.rsqrt %27 : vector<128x1xf32>
    %29 = vector.broadcast %28 : vector<128x1xf32> to vector<128x32xf32>
    %30 = arith.mulf %25, %29 : vector<128x32xf32>
    %31 = vector.broadcast %2 : vector<1x32xf32> to vector<128x32xf32>
    %32 = arith.mulf %30, %31 : vector<128x32xf32>
    %33 = vector.broadcast %3 : vector<1x32xf32> to vector<128x32xf32>
    %34 = arith.addf %32, %33 : vector<128x32xf32>
    %35 = vector.shape_cast %34 : vector<128x32xf32> to vector<8x16x32xf32>
    %cst_10 = arith.constant dense<0.000000e+00> : vector<8x32xf32>
    %36 = vector.multi_reduction <add>, %35, %cst_10 [1] : vector<8x16x32xf32> to vector<8x32xf32>
    %cst_11 = arith.constant 1.600000e+01 : f32
    %37 = vector.broadcast %cst_11 : f32 to vector<8x32xf32>
    %38 = arith.divf %36, %37 : vector<8x32xf32>
    %cst_12 = arith.constant dense<0xFF800000> : vector<8x32xf32>
    %39 = vector.multi_reduction <maximumf>, %35, %cst_12 [1] : vector<8x16x32xf32> to vector<8x32xf32>
    %40 = tpu.concatenate %38, %39 in 0 : vector<8x32xf32>, vector<8x32xf32> -> vector<16x32xf32>
    %41 = arith.truncf %40 : vector<16x32xf32> to vector<16x32xbf16>
    %c0_13 = arith.constant 0 : index
    %c0_14 = arith.constant 0 : index
    %42 = vector.load %arg3[%c0_13, %c0_14] : memref<32x8xbf16, #tpu.memory_space<vmem>>, vector<32x8xbf16>
    %cst_15 = arith.constant dense<0.000000e+00> : vector<16x8xf32>
    %43 = tpu.matmul %41, %42, %cst_15 {dimension_numbers = #tpu.dot_dimension_numbers<[1], [0], [0], [1], [0, 0, 1, 1], [], []>} : vector<16x32xbf16>, vector<32x8xbf16>, vector<16x8xf32> -> vector<16x8xf32>
    %cst_16 = arith.constant 0.000000e+00 : f32
    %44 = vector.broadcast %cst_16 : f32 to vector<16x8xf32>
    %45 = arith.maximumf %43, %44 : vector<16x8xf32>
    %46 = vector.extract_strided_slice %45 {offsets = [0, 0], sizes = [8, 8], strides = [1, 1]} : vector<16x8xf32> to vector<8x8xf32>
    %47 = vector.extract_strided_slice %45 {offsets = [8, 0], sizes = [8, 8], strides = [1, 1]} : vector<16x8xf32> to vector<8x8xf32>
    %48 = arith.addf %46, %47 : vector<8x8xf32>
    %49 = arith.truncf %48 : vector<8x8xf32> to vector<8x8xbf16>
    %c0_17 = arith.constant 0 : index
    %c0_18 = arith.constant 0 : index
    %50 = vector.load %arg4[%c0_17, %c0_18] : memref<8x32xbf16, #tpu.memory_space<vmem>>, vector<8x32xbf16>
    %cst_19 = arith.constant dense<0.000000e+00> : vector<8x32xf32>
    %51 = tpu.matmul %49, %50, %cst_19 {dimension_numbers = #tpu.dot_dimension_numbers<[1], [0], [0], [1], [0, 0, 1, 1], [], []>} : vector<8x8xbf16>, vector<8x32xbf16>, vector<8x32xf32> -> vector<8x32xf32>
    %52 = arith.negf %51 : vector<8x32xf32>
    %53 = math.exp %52 : vector<8x32xf32>
    %cst_20 = arith.constant 1.000000e+00 : f32
    %54 = vector.broadcast %cst_20 : f32 to vector<8x32xf32>
    %55 = arith.addf %54, %53 : vector<8x32xf32>
    %56 = arith.divf %54, %55 : vector<8x32xf32>
    %57 = vector.shape_cast %56 : vector<8x32xf32> to vector<8x1x32xf32>
    %58 = vector.broadcast %57 : vector<8x1x32xf32> to vector<8x16x32xf32>
    %59 = arith.mulf %35, %58 : vector<8x16x32xf32>
    %cst_21 = arith.constant dense<0.000000e+00> : vector<8x16xf32>
    %60 = vector.multi_reduction <add>, %59, %cst_21 [2] : vector<8x16x32xf32> to vector<8x16xf32>
    %cst_22 = arith.constant 3.200000e+01 : f32
    %61 = vector.broadcast %cst_22 : f32 to vector<8x16xf32>
    %62 = arith.divf %60, %61 : vector<8x16xf32>
    %cst_23 = arith.constant dense<0xFF800000> : vector<8x16xf32>
    %63 = vector.multi_reduction <maximumf>, %59, %cst_23 [2] : vector<8x16x32xf32> to vector<8x16xf32>
    %64 = tpu.concatenate %62, %63 in 0 : vector<8x16xf32>, vector<8x16xf32> -> vector<16x16xf32>
    %65 = arith.truncf %64 : vector<16x16xf32> to vector<16x16xbf16>
    %c0_24 = arith.constant 0 : index
    %c0_25 = arith.constant 0 : index
    %66 = vector.load %arg5[%c0_24, %c0_25] : memref<16x32xbf16, #tpu.memory_space<vmem>>, vector<16x32xbf16>
    %cst_26 = arith.constant dense<0.000000e+00> : vector<16x32xf32>
    %67 = tpu.matmul %65, %66, %cst_26 {dimension_numbers = #tpu.dot_dimension_numbers<[1], [0], [0], [1], [0, 0, 1, 1], [], []>} : vector<16x16xbf16>, vector<16x32xbf16>, vector<16x32xf32> -> vector<16x32xf32>
    %68 = vector.extract_strided_slice %67 {offsets = [0, 0], sizes = [8, 16], strides = [1, 1]} : vector<16x32xf32> to vector<8x16xf32>
    %69 = vector.extract_strided_slice %67 {offsets = [8, 16], sizes = [8, 16], strides = [1, 1]} : vector<16x32xf32> to vector<8x16xf32>
    %70 = arith.addf %68, %69 : vector<8x16xf32>
    %71 = vector.broadcast %7 : vector<1x1xf32> to vector<8x16xf32>
    %72 = arith.addf %70, %71 : vector<8x16xf32>
    %73 = arith.negf %72 : vector<8x16xf32>
    %74 = math.exp %73 : vector<8x16xf32>
    %cst_27 = arith.constant 1.000000e+00 : f32
    %75 = vector.broadcast %cst_27 : f32 to vector<8x16xf32>
    %76 = arith.addf %75, %74 : vector<8x16xf32>
    %77 = arith.divf %75, %76 : vector<8x16xf32>
    %78 = vector.shape_cast %77 : vector<8x16xf32> to vector<8x16x1xf32>
    %79 = vector.broadcast %78 : vector<8x16x1xf32> to vector<8x16x32xf32>
    %80 = arith.mulf %59, %79 : vector<8x16x32xf32>
    %81 = vector.extract_strided_slice %80 {offsets = [0, 0, 0], sizes = [8, 1, 32], strides = [1, 1, 1]} : vector<8x16x32xf32> to vector<8x1x32xf32>
    %82 = vector.shape_cast %81 : vector<8x1x32xf32> to vector<8x32xf32>
    %c0_28 = arith.constant 0 : index
    %c0_29 = arith.constant 0 : index
    %83 = vector.load %arg10[%c0_28, %c0_29] : memref<8x512xf32, #tpu.memory_space<vmem>>, vector<8x32xf32>
    tpu.vector_store %arg10[%c0_28, %c0_29], %82 {strides = array<i32>} : memref<8x512xf32, #tpu.memory_space<vmem>>, vector<8x32xf32>,
    %84 = vector.extract_strided_slice %80 {offsets = [0, 1, 0], sizes = [8, 1, 32], strides = [1, 1, 1]} : vector<8x16x32xf32> to vector<8x1x32xf32>
    %85 = vector.shape_cast %84 : vector<8x1x32xf32> to vector<8x32xf32>
    %c0_30 = arith.constant 0 : index
    %c32 = arith.constant 32 : index
    %86 = vector.load %arg10[%c0_30, %c32] : memref<8x512xf32, #tpu.memory_space<vmem>>, vector<8x32xf32>
    tpu.vector_store %arg10[%c0_30, %c32], %85 {strides = array<i32>} : memref<8x512xf32, #tpu.memory_space<vmem>>, vector<8x32xf32>,
    %87 = vector.extract_strided_slice %80 {offsets = [0, 2, 0], sizes = [8, 1, 32], strides = [1, 1, 1]} : vector<8x16x32xf32> to vector<8x1x32xf32>
    %88 = vector.shape_cast %87 : vector<8x1x32xf32> to vector<8x32xf32>
    %c0_31 = arith.constant 0 : index
    %c64 = arith.constant 64 : index
    %89 = vector.load %arg10[%c0_31, %c64] : memref<8x512xf32, #tpu.memory_space<vmem>>, vector<8x32xf32>
    tpu.vector_store %arg10[%c0_31, %c64], %88 {strides = array<i32>} : memref<8x512xf32, #tpu.memory_space<vmem>>, vector<8x32xf32>,
    %90 = vector.extract_strided_slice %80 {offsets = [0, 3, 0], sizes = [8, 1, 32], strides = [1, 1, 1]} : vector<8x16x32xf32> to vector<8x1x32xf32>
    %91 = vector.shape_cast %90 : vector<8x1x32xf32> to vector<8x32xf32>
    %c0_32 = arith.constant 0 : index
    %c96 = arith.constant 96 : index
    %92 = vector.load %arg10[%c0_32, %c96] : memref<8x512xf32, #tpu.memory_space<vmem>>, vector<8x32xf32>
    tpu.vector_store %arg10[%c0_32, %c96], %91 {strides = array<i32>} : memref<8x512xf32, #tpu.memory_space<vmem>>, vector<8x32xf32>,
    %93 = vector.extract_strided_slice %80 {offsets = [0, 4, 0], sizes = [8, 1, 32], strides = [1, 1, 1]} : vector<8x16x32xf32> to vector<8x1x32xf32>
    %94 = vector.shape_cast %93 : vector<8x1x32xf32> to vector<8x32xf32>
    %c0_33 = arith.constant 0 : index
    %c128 = arith.constant 128 : index
    %95 = vector.load %arg10[%c0_33, %c128] : memref<8x512xf32, #tpu.memory_space<vmem>>, vector<8x32xf32>
    tpu.vector_store %arg10[%c0_33, %c128], %94 {strides = array<i32>} : memref<8x512xf32, #tpu.memory_space<vmem>>, vector<8x32xf32>,
    %96 = vector.extract_strided_slice %80 {offsets = [0, 5, 0], sizes = [8, 1, 32], strides = [1, 1, 1]} : vector<8x16x32xf32> to vector<8x1x32xf32>
    %97 = vector.shape_cast %96 : vector<8x1x32xf32> to vector<8x32xf32>
    %c0_34 = arith.constant 0 : index
    %c160 = arith.constant 160 : index
    %98 = vector.load %arg10[%c0_34, %c160] : memref<8x512xf32, #tpu.memory_space<vmem>>, vector<8x32xf32>
    tpu.vector_store %arg10[%c0_34, %c160], %97 {strides = array<i32>} : memref<8x512xf32, #tpu.memory_space<vmem>>, vector<8x32xf32>,
    %99 = vector.extract_strided_slice %80 {offsets = [0, 6, 0], sizes = [8, 1, 32], strides = [1, 1, 1]} : vector<8x16x32xf32> to vector<8x1x32xf32>
    %100 = vector.shape_cast %99 : vector<8x1x32xf32> to vector<8x32xf32>
    %c0_35 = arith.constant 0 : index
    %c192 = arith.constant 192 : index
    %101 = vector.load %arg10[%c0_35, %c192] : memref<8x512xf32, #tpu.memory_space<vmem>>, vector<8x32xf32>
    tpu.vector_store %arg10[%c0_35, %c192], %100 {strides = array<i32>} : memref<8x512xf32, #tpu.memory_space<vmem>>, vector<8x32xf32>,
    %102 = vector.extract_strided_slice %80 {offsets = [0, 7, 0], sizes = [8, 1, 32], strides = [1, 1, 1]} : vector<8x16x32xf32> to vector<8x1x32xf32>
    %103 = vector.shape_cast %102 : vector<8x1x32xf32> to vector<8x32xf32>
    %c0_36 = arith.constant 0 : index
    %c224 = arith.constant 224 : index
    %104 = vector.load %arg10[%c0_36, %c224] : memref<8x512xf32, #tpu.memory_space<vmem>>, vector<8x32xf32>
    tpu.vector_store %arg10[%c0_36, %c224], %103 {strides = array<i32>} : memref<8x512xf32, #tpu.memory_space<vmem>>, vector<8x32xf32>,
    %105 = vector.extract_strided_slice %80 {offsets = [0, 8, 0], sizes = [8, 1, 32], strides = [1, 1, 1]} : vector<8x16x32xf32> to vector<8x1x32xf32>
    %106 = vector.shape_cast %105 : vector<8x1x32xf32> to vector<8x32xf32>
    %c0_37 = arith.constant 0 : index
    %c256 = arith.constant 256 : index
    %107 = vector.load %arg10[%c0_37, %c256] : memref<8x512xf32, #tpu.memory_space<vmem>>, vector<8x32xf32>
    tpu.vector_store %arg10[%c0_37, %c256], %106 {strides = array<i32>} : memref<8x512xf32, #tpu.memory_space<vmem>>, vector<8x32xf32>,
    %108 = vector.extract_strided_slice %80 {offsets = [0, 9, 0], sizes = [8, 1, 32], strides = [1, 1, 1]} : vector<8x16x32xf32> to vector<8x1x32xf32>
    %109 = vector.shape_cast %108 : vector<8x1x32xf32> to vector<8x32xf32>
    %c0_38 = arith.constant 0 : index
    %c288 = arith.constant 288 : index
    %110 = vector.load %arg10[%c0_38, %c288] : memref<8x512xf32, #tpu.memory_space<vmem>>, vector<8x32xf32>
    tpu.vector_store %arg10[%c0_38, %c288], %109 {strides = array<i32>} : memref<8x512xf32, #tpu.memory_space<vmem>>, vector<8x32xf32>,
    %111 = vector.extract_strided_slice %80 {offsets = [0, 10, 0], sizes = [8, 1, 32], strides = [1, 1, 1]} : vector<8x16x32xf32> to vector<8x1x32xf32>
    %112 = vector.shape_cast %111 : vector<8x1x32xf32> to vector<8x32xf32>
    %c0_39 = arith.constant 0 : index
    %c320 = arith.constant 320 : index
    %113 = vector.load %arg10[%c0_39, %c320] : memref<8x512xf32, #tpu.memory_space<vmem>>, vector<8x32xf32>
    tpu.vector_store %arg10[%c0_39, %c320], %112 {strides = array<i32>} : memref<8x512xf32, #tpu.memory_space<vmem>>, vector<8x32xf32>,
    %114 = vector.extract_strided_slice %80 {offsets = [0, 11, 0], sizes = [8, 1, 32], strides = [1, 1, 1]} : vector<8x16x32xf32> to vector<8x1x32xf32>
    %115 = vector.shape_cast %114 : vector<8x1x32xf32> to vector<8x32xf32>
    %c0_40 = arith.constant 0 : index
    %c352 = arith.constant 352 : index
    %116 = vector.load %arg10[%c0_40, %c352] : memref<8x512xf32, #tpu.memory_space<vmem>>, vector<8x32xf32>
    tpu.vector_store %arg10[%c0_40, %c352], %115 {strides = array<i32>} : memref<8x512xf32, #tpu.memory_space<vmem>>, vector<8x32xf32>,
    %117 = vector.extract_strided_slice %80 {offsets = [0, 12, 0], sizes = [8, 1, 32], strides = [1, 1, 1]} : vector<8x16x32xf32> to vector<8x1x32xf32>
    %118 = vector.shape_cast %117 : vector<8x1x32xf32> to vector<8x32xf32>
    %c0_41 = arith.constant 0 : index
    %c384 = arith.constant 384 : index
    %119 = vector.load %arg10[%c0_41, %c384] : memref<8x512xf32, #tpu.memory_space<vmem>>, vector<8x32xf32>
    tpu.vector_store %arg10[%c0_41, %c384], %118 {strides = array<i32>} : memref<8x512xf32, #tpu.memory_space<vmem>>, vector<8x32xf32>,
    %120 = vector.extract_strided_slice %80 {offsets = [0, 13, 0], sizes = [8, 1, 32], strides = [1, 1, 1]} : vector<8x16x32xf32> to vector<8x1x32xf32>
    %121 = vector.shape_cast %120 : vector<8x1x32xf32> to vector<8x32xf32>
    %c0_42 = arith.constant 0 : index
    %c416 = arith.constant 416 : index
    %122 = vector.load %arg10[%c0_42, %c416] : memref<8x512xf32, #tpu.memory_space<vmem>>, vector<8x32xf32>
    tpu.vector_store %arg10[%c0_42, %c416], %121 {strides = array<i32>} : memref<8x512xf32, #tpu.memory_space<vmem>>, vector<8x32xf32>,
    %123 = vector.extract_strided_slice %80 {offsets = [0, 14, 0], sizes = [8, 1, 32], strides = [1, 1, 1]} : vector<8x16x32xf32> to vector<8x1x32xf32>
    %124 = vector.shape_cast %123 : vector<8x1x32xf32> to vector<8x32xf32>
    %c0_43 = arith.constant 0 : index
    %c448 = arith.constant 448 : index
    %125 = vector.load %arg10[%c0_43, %c448] : memref<8x512xf32, #tpu.memory_space<vmem>>, vector<8x32xf32>
    tpu.vector_store %arg10[%c0_43, %c448], %124 {strides = array<i32>} : memref<8x512xf32, #tpu.memory_space<vmem>>, vector<8x32xf32>,
    %126 = vector.extract_strided_slice %80 {offsets = [0, 15, 0], sizes = [8, 1, 32], strides = [1, 1, 1]} : vector<8x16x32xf32> to vector<8x1x32xf32>
    %127 = vector.shape_cast %126 : vector<8x1x32xf32> to vector<8x32xf32>
    %c0_44 = arith.constant 0 : index
    %c480 = arith.constant 480 : index
    %128 = vector.load %arg10[%c0_44, %c480] : memref<8x512xf32, #tpu.memory_space<vmem>>, vector<8x32xf32>
    tpu.vector_store %arg10[%c0_44, %c480], %127 {strides = array<i32>} : memref<8x512xf32, #tpu.memory_space<vmem>>, vector<8x32xf32>,
    %c0_45 = arith.constant 0 : index
    %c0_46 = arith.constant 0 : index
    %129 = vector.load %arg10[%c0_45, %c0_46] : memref<8x512xf32, #tpu.memory_space<vmem>>, vector<8x512xf32>
    %130 = arith.truncf %129 : vector<8x512xf32> to vector<8x512xbf16>
    %c0_47 = arith.constant 0 : index
    %c0_48 = arith.constant 0 : index
    %131 = vector.load %arg6[%c0_47, %c0_48] : memref<512x128xbf16, #tpu.memory_space<vmem>>, vector<512x128xbf16>
    %cst_49 = arith.constant dense<0.000000e+00> : vector<8x128xf32>
    %132 = tpu.matmul %130, %131, %cst_49 {dimension_numbers = #tpu.dot_dimension_numbers<[1], [0], [0], [1], [0, 0, 1, 1], [], []>} : vector<8x512xbf16>, vector<512x128xbf16>, vector<8x128xf32> -> vector<8x128xf32>
    %133 = vector.broadcast %4 : vector<1x128xf32> to vector<8x128xf32>
    %134 = arith.addf %132, %133 : vector<8x128xf32>
    %cst_50 = arith.constant 0.000000e+00 : f32
    %135 = vector.broadcast %cst_50 : f32 to vector<8x128xf32>
    %136 = arith.maximumf %134, %135 : vector<8x128xf32>
    %137 = arith.truncf %136 : vector<8x128xf32> to vector<8x128xbf16>
    %c0_51 = arith.constant 0 : index
    %c0_52 = arith.constant 0 : index
    %138 = vector.load %arg7[%c0_51, %c0_52] : memref<128x64xbf16, #tpu.memory_space<vmem>>, vector<128x64xbf16>
    %cst_53 = arith.constant dense<0.000000e+00> : vector<8x64xf32>
    %139 = tpu.matmul %137, %138, %cst_53 {dimension_numbers = #tpu.dot_dimension_numbers<[1], [0], [0], [1], [0, 0, 1, 1], [], []>} : vector<8x128xbf16>, vector<128x64xbf16>, vector<8x64xf32> -> vector<8x64xf32>
    %140 = vector.broadcast %5 : vector<1x64xf32> to vector<8x64xf32>
    %141 = arith.addf %139, %140 : vector<8x64xf32>
    %cst_54 = arith.constant 0.000000e+00 : f32
    %142 = vector.broadcast %cst_54 : f32 to vector<8x64xf32>
    %143 = arith.maximumf %141, %142 : vector<8x64xf32>
    %144 = arith.truncf %143 : vector<8x64xf32> to vector<8x64xbf16>
    %c0_55 = arith.constant 0 : index
    %c0_56 = arith.constant 0 : index
    %145 = vector.load %arg8[%c0_55, %c0_56] : memref<64x128xbf16, #tpu.memory_space<vmem>>, vector<64x128xbf16>
    %cst_57 = arith.constant dense<0.000000e+00> : vector<8x128xf32>
    %146 = tpu.matmul %144, %145, %cst_57 {dimension_numbers = #tpu.dot_dimension_numbers<[1], [0], [0], [1], [0, 0, 1, 1], [], []>} : vector<8x64xbf16>, vector<64x128xbf16>, vector<8x128xf32> -> vector<8x128xf32>
    %147 = vector.broadcast %6 : vector<1x128xf32> to vector<8x128xf32>
    %148 = arith.addf %146, %147 : vector<8x128xf32>
    %c0_58 = arith.constant 0 : index
    %c0_59 = arith.constant 0 : index
    %149 = vector.load %arg9[%c0_58, %c0_59] : memref<8x128xf32, #tpu.memory_space<vmem>>, vector<8x128xf32>
    tpu.vector_store %arg9[%c0_58, %c0_59], %148 {strides = array<i32>} : memref<8x128xf32, #tpu.memory_space<vmem>>, vector<8x128xf32>,
    return
  }
}

</mosaic_0001>

<llo_original>
// kernel: anetwork_forward.1
$region0: #{anetwork_forward.1}
  #allocation0 [shape = 'u32[]', space=smem, size = 0x4, offset = 0x4, fixed_abs, tag = 'smem constant byte address 0x4 - core index']
  #allocation1 [shape = 'u32[144,128]{1,0:T(1,128)}', space=vmem, size = 0x12000, scoped, tag = 'internal scratch']
  #allocation2 [shape = 'f32[8,512]{1,0:T(8,128)}', space=vmem, size = 0x4000, scoped, tag = 'scratch operand']
  %s0 = inlined_call_operand.vmem [shape: bf16[128,64], index: 0, kind: input, shape index: {}]
  %s1 = inlined_call_operand.vmem [shape: bf16[64,32], index: 1, kind: input, shape index: {}]
  %s2 = inlined_call_operand.vmem [shape: f32[8,128], index: 2, kind: input, shape index: {}]
  %s3 = inlined_call_operand.vmem [shape: bf16[32,8], index: 3, kind: input, shape index: {}]
  %s4 = inlined_call_operand.vmem [shape: bf16[8,32], index: 4, kind: input, shape index: {}]
  %s5 = inlined_call_operand.vmem [shape: bf16[16,32], index: 5, kind: input, shape index: {}]
  %s6 = inlined_call_operand.vmem [shape: bf16[512,128], index: 6, kind: input, shape index: {}]
  %s7 = inlined_call_operand.vmem [shape: bf16[128,64], index: 7, kind: input, shape index: {}]
  %s8 = inlined_call_operand.vmem [shape: bf16[64,128], index: 8, kind: input, shape index: {}]
  %s9 = inlined_call_operand.vmem [shape: f32[8,128], index: 9, kind: output, shape index: {}]
  %s10 = sld [smem:[#allocation0]]
  $region46: #{anetwork_forward.1} parent=0
    _
  %s12 = ssub.s32 1, %s10
  %s13 = scalar_select 0, %s12, %s10
  // Predicated region
  $region2: #{anetwork_forward.1} parent=0 // pred_check
    _
  $region3: #{anetwork_forward.1} parent=0 // pred_check_branch
    %15 = sbr.rel (0) target = $region5
  $region4: #{anetwork_forward.1} parent=0 // pred_region
    _
  $region5: #{anetwork_forward.1} parent=0 // pred_fallthru
    _
  // Predicated region
  $region6: #{anetwork_forward.1} parent=0 // pred_check
    _
  $region7: #{anetwork_forward.1} parent=0 // pred_check_branch
    %17 = sbr.rel (0) target = $region9
  $region8: #{anetwork_forward.1} parent=0 // pred_region
    _
  $region9: #{anetwork_forward.1} parent=0 // pred_fallthru
    _
  // Predicated region
  $region10: #{anetwork_forward.1} parent=0 // pred_check
    _
  $region11: #{anetwork_forward.1} parent=0 // pred_check_branch
    %19 = sbr.rel (0) target = $region13
  $region12: #{anetwork_forward.1} parent=0 // pred_region
    _
  $region13: #{anetwork_forward.1} parent=0 // pred_fallthru
    _
  // Predicated region
  $region14: #{anetwork_forward.1} parent=0 // pred_check
    _
  $region15: #{anetwork_forward.1} parent=0 // pred_check_branch
    %21 = sbr.rel (0) target = $region17
  $region16: #{anetwork_forward.1} parent=0 // pred_region
    _
  $region17: #{anetwork_forward.1} parent=0 // pred_fallthru
    _
  // Predicated region
  $region18: #{anetwork_forward.1} parent=0 // pred_check
    _
  $region19: #{anetwork_forward.1} parent=0 // pred_check_branch
    %23 = sbr.rel (0) target = $region21
  $region20: #{anetwork_forward.1} parent=0 // pred_region
    _
  $region21: #{anetwork_forward.1} parent=0 // pred_fallthru
    _
  // Predicated region
  $region22: #{anetwork_forward.1} parent=0 // pred_check
    _
  $region23: #{anetwork_forward.1} parent=0 // pred_check_branch
    %25 = sbr.rel (0) target = $region25
  $region24: #{anetwork_forward.1} parent=0 // pred_region
    _
  $region25: #{anetwork_forward.1} parent=0 // pred_fallthru
    _
  // Predicated region
  $region26: #{anetwork_forward.1} parent=0 // pred_check
    _
  $region27: #{anetwork_forward.1} parent=0 // pred_check_branch
    %27 = sbr.rel (0) target = $region29
  $region28: #{anetwork_forward.1} parent=0 // pred_region
    _
  $region29: #{anetwork_forward.1} parent=0 // pred_fallthru
    _
  // Predicated region
  $region30: #{anetwork_forward.1} parent=0 // pred_check
    _
  $region31: #{anetwork_forward.1} parent=0 // pred_check_branch
    %29 = sbr.rel (0) target = $region33
  $region32: #{anetwork_forward.1} parent=0 // pred_region
    _
  $region33: #{anetwork_forward.1} parent=0 // pred_fallthru
    _
  // Predicated region
  $region34: #{anetwork_forward.1} parent=0 // pred_check
    _
  $region35: #{anetwork_forward.1} parent=0 // pred_check_branch
    %31 = sbr.rel (0) target = $region37
  $region36: #{anetwork_forward.1} parent=0 // pred_region
    _
  $region37: #{anetwork_forward.1} parent=0 // pred_fallthru
    _
  %v33 = vld [vmem:[%s2] sm:$0xff]
  %v34 = vld [vmem:[%s0] sm:$0xf]
  %v35 = vld [vmem:[%s0 + $0x4] sm:$0xf]
  %v36 = vld [vmem:[%s0 + $0x8] sm:$0xf]
  %v37 = vld [vmem:[%s0 + $0xc] sm:$0xf]
  %v38 = vld [vmem:[%s0 + $0x10] sm:$0xf]
  %v39 = vld [vmem:[%s0 + $0x14] sm:$0xf]
  %v40 = vld [vmem:[%s0 + $0x18] sm:$0xf]
  %v41 = vld [vmem:[%s0 + $0x1c] sm:$0xf]
  %v42 = vld [vmem:[%s0 + $0x20] sm:$0xf]
  %v43 = vld [vmem:[%s0 + $0x24] sm:$0xf]
  %v44 = vld [vmem:[%s0 + $0x28] sm:$0xf]
  %v45 = vld [vmem:[%s0 + $0x2c] sm:$0xf]
  %v46 = vld [vmem:[%s0 + $0x30] sm:$0xf]
  %v47 = vld [vmem:[%s0 + $0x34] sm:$0xf]
  %v48 = vld [vmem:[%s0 + $0x38] sm:$0xf]
  %v49 = vld [vmem:[%s0 + $0x3c] sm:$0xf]
  %v50 = vld [vmem:[%s1] sm:$0xf]
  %v51 = vld [vmem:[%s1 + $0x4] sm:$0xf]
  %v52 = vld [vmem:[%s1 + $0x8] sm:$0xf]
  %v53 = vld [vmem:[%s1 + $0xc] sm:$0xf]
  %v54 = vld [vmem:[%s1 + $0x10] sm:$0xf]
  %v55 = vld [vmem:[%s1 + $0x14] sm:$0xf]
  %v56 = vld [vmem:[%s1 + $0x18] sm:$0xf]
  %v57 = vld [vmem:[%s1 + $0x1c] sm:$0xf]
  %v58 = vlaneseq
  %v59 = vshrl.u32 %v58, 7
  %v60 = vsub.s32 0, %v59
  %v61 = vrot.slane %v33, %v60
  %v78 = vunpack.c.l.b16 %v34
  %v79 = vunpack.c.l.b16 %v35
  %v80 = vunpack.c.l.b16 %v36
  %v81 = vunpack.c.l.b16 %v37
  %v82 = vunpack.c.l.b16 %v38
  %v83 = vunpack.c.l.b16 %v39
  %v84 = vunpack.c.l.b16 %v40
  %v85 = vunpack.c.l.b16 %v41
  %v86 = vunpack.c.l.b16 %v42
  %v87 = vunpack.c.l.b16 %v43
  %v88 = vunpack.c.l.b16 %v44
  %v89 = vunpack.c.l.b16 %v45
  %v90 = vunpack.c.l.b16 %v46
  %v91 = vunpack.c.l.b16 %v47
  %v92 = vunpack.c.l.b16 %v48
  %v93 = vunpack.c.l.b16 %v49
  %v94 = vpack.c.b16 %v79, %v78
  %v95 = vpack.c.b16 %v81, %v80
  %v96 = vpack.c.b16 %v83, %v82
  %v97 = vpack.c.b16 %v85, %v84
  %v98 = vpack.c.b16 %v87, %v86
  %v99 = vpack.c.b16 %v89, %v88
  %v100 = vpack.c.b16 %v91, %v90
  %v101 = vpack.c.b16 %v93, %v92
  %v110 = vunpack.c.l.b16 %v50
  %v111 = vunpack.c.l.b16 %v51
  %v112 = vunpack.c.l.b16 %v52
  %v113 = vunpack.c.l.b16 %v53
  %v114 = vunpack.c.l.b16 %v54
  %v115 = vunpack.c.l.b16 %v55
  %v116 = vunpack.c.l.b16 %v56
  %v117 = vunpack.c.l.b16 %v57
  %v118 = vpack.c.b16 %v111, %v110
  %v119 = vpack.c.b16 %v113, %v112
  %v120 = vpack.c.b16 %v115, %v114
  %v121 = vpack.c.b16 %v117, %v116
  %vm126 = vcmask 523264
  %v128 = vsel %vm126, %v94, 0
  %v131 = vsel %vm126, %v95, 0
  %v134 = vsel %vm126, %v96, 0
  %v137 = vsel %vm126, %v97, 0
  %v140 = vsel %vm126, %v98, 0
  %v143 = vsel %vm126, %v99, 0
  %v146 = vsel %vm126, %v100, 0
  %v149 = vsel %vm126, %v101, 0
  %151 = vmatprep.subr.bf16.mxu0 0
  %152 = vmatpush1.bf16.msra.mxu0 0
  %153 = vmatprep.subr.bf16.mxu0 0
  %154 = vmatpush1.bf16.msra.mxu0 0
  %155 = vmatprep.subr.bf16.mxu0 0
  %156 = vmatpush1.bf16.msra.mxu0 0
  %157 = vmatprep.subr.bf16.mxu0 0
  %158 = vmatpush1.bf16.msra.mxu0 0
  %159 = vmatprep.subr.bf16.mxu0 0
  %160 = vmatpush1.bf16.msra.mxu0 %v121
  %161 = vmatprep.subr.bf16.mxu0 0
  %162 = vmatpush1.bf16.msra.mxu0 %v120
  %163 = vmatprep.subr.bf16.mxu0 0
  %164 = vmatpush1.bf16.msra.mxu0 %v119
  %165 = vmatprep.subr.bf16.mxu0 0
  %166 = vmatpush1.bf16.msra.mxu0 %v118
  %167 = vmatprep.subr.bf16.mxu0 0
  %168 = vmatpush2.bf16.msra.mxu0 0
  %169 = vmatprep.subr.bf16.mxu0 0
  %170 = vmatpush2.bf16.msra.mxu0 0
  %171 = vmatprep.subr.bf16.mxu0 0
  %172 = vmatpush2.bf16.msra.mxu0 0
  %173 = vmatprep.subr.bf16.mxu0 0
  %174 = vmatpush2.bf16.msra.mxu0 0
  %175 = vmatprep.subr.bf16.mxu0 0
  %176 = vmatpush2.bf16.msra.mxu0 0
  %177 = vmatprep.subr.bf16.mxu0 0
  %178 = vmatpush2.bf16.msra.mxu0 0
  %179 = vmatprep.subr.bf16.mxu0 0
  %180 = vmatpush2.bf16.msra.mxu0 0
  %181 = vmatprep.subr.bf16.mxu0 0
  %182 = vmatpush2.bf16.msra.mxu0 0
  %183 = vmatprep.mubr.bf16.mxu0 0
  %184 = vmatmul.mubr.bf16.gmra.mxu0 %v128
  %v185 = vpop.f32.mrf.mxu0
  %v186 = vadd.f32 %v61, %v185
  %v187 = vpop.f32.mrf.mxu0
  %v188 = vpop.f32.mrf.mxu0
  %v189 = vadd.f32 %v61, %v188
  %v190 = vpop.f32.mrf.mxu0
  %191 = vmatprep.mubr.bf16.mxu0 0
  %192 = vmatmul.mubr.bf16.gmra.mxu0 %v131
  %v193 = vpop.f32.mrf.mxu0
  %v194 = vadd.f32 %v61, %v193
  %v195 = vpop.f32.mrf.mxu0
  %v196 = vpop.f32.mrf.mxu0
  %v197 = vadd.f32 %v61, %v196
  %v198 = vpop.f32.mrf.mxu0
  %199 = vmatprep.mubr.bf16.mxu0 0
  %200 = vmatmul.mubr.bf16.gmra.mxu0 %v134
  %v201 = vpop.f32.mrf.mxu0
  %v202 = vadd.f32 %v61, %v201
  %v203 = vpop.f32.mrf.mxu0
  %v204 = vpop.f32.mrf.mxu0
  %v205 = vadd.f32 %v61, %v204
  %v206 = vpop.f32.mrf.mxu0
  %207 = vmatprep.mubr.bf16.mxu0 0
  %208 = vmatmul.mubr.bf16.gmra.mxu0 %v137
  %v209 = vpop.f32.mrf.mxu0
  %v210 = vadd.f32 %v61, %v209
  %v211 = vpop.f32.mrf.mxu0
  %v212 = vpop.f32.mrf.mxu0
  %v213 = vadd.f32 %v61, %v212
  %v214 = vpop.f32.mrf.mxu0
  %215 = vmatprep.mubr.bf16.mxu0 0
  %216 = vmatmul.mubr.bf16.gmra.mxu0 %v140
  %v217 = vpop.f32.mrf.mxu0
  %v218 = vadd.f32 %v61, %v217
  %v219 = vpop.f32.mrf.mxu0
  %v220 = vpop.f32.mrf.mxu0
  %v221 = vadd.f32 %v61, %v220
  %v222 = vpop.f32.mrf.mxu0
  %223 = vmatprep.mubr.bf16.mxu0 0
  %224 = vmatmul.mubr.bf16.gmra.mxu0 %v143
  %v225 = vpop.f32.mrf.mxu0
  %v226 = vadd.f32 %v61, %v225
  %v227 = vpop.f32.mrf.mxu0
  %v228 = vpop.f32.mrf.mxu0
  %v229 = vadd.f32 %v61, %v228
  %v230 = vpop.f32.mrf.mxu0
  %231 = vmatprep.mubr.bf16.mxu0 0
  %232 = vmatmul.mubr.bf16.gmra.mxu0 %v146
  %v233 = vpop.f32.mrf.mxu0
  %v234 = vadd.f32 %v61, %v233
  %v235 = vpop.f32.mrf.mxu0
  %v236 = vpop.f32.mrf.mxu0
  %v237 = vadd.f32 %v61, %v236
  %v238 = vpop.f32.mrf.mxu0
  %239 = vmatprep.mubr.bf16.mxu0 0
  %240 = vmatmul.mubr.bf16.gmra.mxu0 %v149
  %v241 = vpop.f32.mrf.mxu0
  %v242 = vadd.f32 %v61, %v241
  %v243 = vpop.f32.mrf.mxu0
  %v244 = vpop.f32.mrf.mxu0
  %v245 = vadd.f32 %v61, %v244
  %v246 = vpop.f32.mrf.mxu0
  %247 = vdwg.mxu0
  %vm248 = vcmask 261120
  %v249 = vsel %vm248, %v186, 0.0
  %250 = vadd.xlane.f32.xlu0 %v249
  %v251 = vpop.xlane.xlu0 %250
  %v252 = vsel %vm248, %v189, 0.0
  %253 = vadd.xlane.f32.xlu0 %v252
  %v254 = vpop.xlane.xlu0 %253
  %v255 = vsel %vm248, %v194, 0.0
  %256 = vadd.xlane.f32.xlu0 %v255
  %v257 = vpop.xlane.xlu0 %256
  %v258 = vsel %vm248, %v197, 0.0
  %259 = vadd.xlane.f32.xlu0 %v258
  %v260 = vpop.xlane.xlu0 %259
  %v261 = vsel %vm248, %v202, 0.0
  %262 = vadd.xlane.f32.xlu0 %v261
  %v263 = vpop.xlane.xlu0 %262
  %v264 = vsel %vm248, %v205, 0.0
  %265 = vadd.xlane.f32.xlu0 %v264
  %v266 = vpop.xlane.xlu0 %265
  %v267 = vsel %vm248, %v210, 0.0
  %268 = vadd.xlane.f32.xlu0 %v267
  %v269 = vpop.xlane.xlu0 %268
  %v270 = vsel %vm248, %v213, 0.0
  %271 = vadd.xlane.f32.xlu0 %v270
  %v272 = vpop.xlane.xlu0 %271
  %v273 = vsel %vm248, %v218, 0.0
  %274 = vadd.xlane.f32.xlu0 %v273
  %v275 = vpop.xlane.xlu0 %274
  %v276 = vsel %vm248, %v221, 0.0
  %277 = vadd.xlane.f32.xlu0 %v276
  %v278 = vpop.xlane.xlu0 %277
  %v279 = vsel %vm248, %v226, 0.0
  %280 = vadd.xlane.f32.xlu0 %v279
  %v281 = vpop.xlane.xlu0 %280
  %v282 = vsel %vm248, %v229, 0.0
  %283 = vadd.xlane.f32.xlu0 %v282
  %v284 = vpop.xlane.xlu0 %283
  %v285 = vsel %vm248, %v234, 0.0
  %286 = vadd.xlane.f32.xlu0 %v285
  %v287 = vpop.xlane.xlu0 %286
  %v288 = vsel %vm248, %v237, 0.0
  %289 = vadd.xlane.f32.xlu0 %v288
  %v290 = vpop.xlane.xlu0 %289
  %v291 = vsel %vm248, %v242, 0.0
  %292 = vadd.xlane.f32.xlu0 %v291
  %v293 = vpop.xlane.xlu0 %292
  %v294 = vsel %vm248, %v245, 0.0
  %295 = vadd.xlane.f32.xlu0 %v294
  %v296 = vpop.xlane.xlu0 %295
  %v297 = vrcp.pop 32.0
  %v298 = vmul.f32 %v251, %v297
  %v299 = vmul.f32 %v254, %v297
  %v300 = vmul.f32 %v257, %v297
  %v301 = vmul.f32 %v260, %v297
  %v302 = vmul.f32 %v263, %v297
  %v303 = vmul.f32 %v266, %v297
  %v304 = vmul.f32 %v269, %v297
  %v305 = vmul.f32 %v272, %v297
  %v306 = vmul.f32 %v275, %v297
  %v307 = vmul.f32 %v278, %v297
  %v308 = vmul.f32 %v281, %v297
  %v309 = vmul.f32 %v284, %v297
  %v310 = vmul.f32 %v287, %v297
  %v311 = vmul.f32 %v290, %v297
  %v312 = vmul.f32 %v293, %v297
  %v313 = vmul.f32 %v296, %v297
  %v314 = vsub.f32 %v186, %v298
  %v315 = vsub.f32 %v189, %v299
  %v316 = vsub.f32 %v194, %v300
  %v317 = vsub.f32 %v197, %v301
  %v318 = vsub.f32 %v202, %v302
  %v319 = vsub.f32 %v205, %v303
  %v320 = vsub.f32 %v210, %v304
  %v321 = vsub.f32 %v213, %v305
  %v322 = vsub.f32 %v218, %v306
  %v323 = vsub.f32 %v221, %v307
  %v324 = vsub.f32 %v226, %v308
  %v325 = vsub.f32 %v229, %v309
  %v326 = vsub.f32 %v234, %v310
  %v327 = vsub.f32 %v237, %v311
  %v328 = vsub.f32 %v242, %v312
  %v329 = vsub.f32 %v245, %v313
  %v330 = vmul.f32 %v314, %v314
  %v331 = vmul.f32 %v315, %v315
  %v332 = vmul.f32 %v316, %v316
  %v333 = vmul.f32 %v317, %v317
  %v334 = vmul.f32 %v318, %v318
  %v335 = vmul.f32 %v319, %v319
  %v336 = vmul.f32 %v320, %v320
  %v337 = vmul.f32 %v321, %v321
  %v338 = vmul.f32 %v322, %v322
  %v339 = vmul.f32 %v323, %v323
  %v340 = vmul.f32 %v324, %v324
  %v341 = vmul.f32 %v325, %v325
  %v342 = vmul.f32 %v326, %v326
  %v343 = vmul.f32 %v327, %v327
  %v344 = vmul.f32 %v328, %v328
  %v345 = vmul.f32 %v329, %v329
  %v346 = vsel %vm248, %v330, 0.0
  %347 = vadd.xlane.f32.xlu0 %v346
  %v348 = vpop.xlane.xlu0 %347
  %v349 = vsel %vm248, %v331, 0.0
  %350 = vadd.xlane.f32.xlu0 %v349
  %v351 = vpop.xlane.xlu0 %350
  %v352 = vsel %vm248, %v332, 0.0
  %353 = vadd.xlane.f32.xlu0 %v352
  %v354 = vpop.xlane.xlu0 %353
  %v355 = vsel %vm248, %v333, 0.0
  %356 = vadd.xlane.f32.xlu0 %v355
  %v357 = vpop.xlane.xlu0 %356
  %v358 = vsel %vm248, %v334, 0.0
  %359 = vadd.xlane.f32.xlu0 %v358
  %v360 = vpop.xlane.xlu0 %359
  %v361 = vsel %vm248, %v335, 0.0
  %362 = vadd.xlane.f32.xlu0 %v361
  %v363 = vpop.xlane.xlu0 %362
  %v364 = vsel %vm248, %v336, 0.0
  %365 = vadd.xlane.f32.xlu0 %v364
  %v366 = vpop.xlane.xlu0 %365
  %v367 = vsel %vm248, %v337, 0.0
  %368 = vadd.xlane.f32.xlu0 %v367
  %v369 = vpop.xlane.xlu0 %368
  %v370 = vsel %vm248, %v338, 0.0
  %371 = vadd.xlane.f32.xlu0 %v370
  %v372 = vpop.xlane.xlu0 %371
  %v373 = vsel %vm248, %v339, 0.0
  %374 = vadd.xlane.f32.xlu0 %v373
  %v375 = vpop.xlane.xlu0 %374
  %v376 = vsel %vm248, %v340, 0.0
  %377 = vadd.xlane.f32.xlu0 %v376
  %v378 = vpop.xlane.xlu0 %377
  %v379 = vsel %vm248, %v341, 0.0
  %380 = vadd.xlane.f32.xlu0 %v379
  %v381 = vpop.xlane.xlu0 %380
  %v382 = vsel %vm248, %v342, 0.0
  %383 = vadd.xlane.f32.xlu0 %v382
  %v384 = vpop.xlane.xlu0 %383
  %v385 = vsel %vm248, %v343, 0.0
  %386 = vadd.xlane.f32.xlu0 %v385
  %v387 = vpop.xlane.xlu0 %386
  %v388 = vsel %vm248, %v344, 0.0
  %389 = vadd.xlane.f32.xlu0 %v388
  %v390 = vpop.xlane.xlu0 %389
  %v391 = vsel %vm248, %v345, 0.0
  %392 = vadd.xlane.f32.xlu0 %v391
  %v393 = vpop.xlane.xlu0 %392
  %v394 = vmul.f32 %v348, %v297
  %v395 = vmul.f32 %v351, %v297
  %v396 = vmul.f32 %v354, %v297
  %v397 = vmul.f32 %v357, %v297
  %v398 = vmul.f32 %v360, %v297
  %v399 = vmul.f32 %v363, %v297
  %v400 = vmul.f32 %v366, %v297
  %v401 = vmul.f32 %v369, %v297
  %v402 = vmul.f32 %v372, %v297
  %v403 = vmul.f32 %v375, %v297
  %v404 = vmul.f32 %v378, %v297
  %v405 = vmul.f32 %v381, %v297
  %v406 = vmul.f32 %v384, %v297
  %v407 = vmul.f32 %v387, %v297
  %v408 = vmul.f32 %v390, %v297
  %v409 = vmul.f32 %v393, %v297
  %v410 = vadd.f32 %v394, 1e-06
  %v411 = vadd.f32 %v395, 1e-06
  %v412 = vadd.f32 %v396, 1e-06
  %v413 = vadd.f32 %v397, 1e-06
  %v414 = vadd.f32 %v398, 1e-06
  %v415 = vadd.f32 %v399, 1e-06
  %v416 = vadd.f32 %v400, 1e-06
  %v417 = vadd.f32 %v401, 1e-06
  %v418 = vadd.f32 %v402, 1e-06
  %v419 = vadd.f32 %v403, 1e-06
  %v420 = vadd.f32 %v404, 1e-06
  %v421 = vadd.f32 %v405, 1e-06
  %v422 = vadd.f32 %v406, 1e-06
  %v423 = vadd.f32 %v407, 1e-06
  %v424 = vadd.f32 %v408, 1e-06
  %v425 = vadd.f32 %v409, 1e-06
  %v426 = vrsqrt.pop %v410
  %v427 = vrsqrt.pop %v411
  %v428 = vrsqrt.pop %v412
  %v429 = vrsqrt.pop %v413
  %v430 = vrsqrt.pop %v414
  %v431 = vrsqrt.pop %v415
  %v432 = vrsqrt.pop %v416
  %v433 = vrsqrt.pop %v417
  %v434 = vrsqrt.pop %v418
  %v435 = vrsqrt.pop %v419
  %v436 = vrsqrt.pop %v420
  %v437 = vrsqrt.pop %v421
  %v438 = vrsqrt.pop %v422
  %v439 = vrsqrt.pop %v423
  %v440 = vrsqrt.pop %v424
  %v441 = vrsqrt.pop %v425
  %v442 = vmul.f32 %v314, %v426
  %v443 = vmul.f32 %v315, %v427
  %v444 = vmul.f32 %v316, %v428
  %v445 = vmul.f32 %v317, %v429
  %v446 = vmul.f32 %v318, %v430
  %v447 = vmul.f32 %v319, %v431
  %v448 = vmul.f32 %v320, %v432
  %v449 = vmul.f32 %v321, %v433
  %v450 = vmul.f32 %v322, %v434
  %v451 = vmul.f32 %v323, %v435
  %v452 = vmul.f32 %v324, %v436
  %v453 = vmul.f32 %v325, %v437
  %v454 = vmul.f32 %v326, %v438
  %v455 = vmul.f32 %v327, %v439
  %v456 = vmul.f32 %v328, %v440
  %v457 = vmul.f32 %v329, %v441
  %v458 = vlaneseq
  %v459 = vshrl.u32 %v458, 7
  %v460 = vsub.s32 1, %v459
  %v461 = vrot.slane %v33, %v460
  %v462 = vmul.f32 %v442, %v461
  %v463 = vmul.f32 %v443, %v461
  %v464 = vmul.f32 %v444, %v461
  %v465 = vmul.f32 %v445, %v461
  %v466 = vmul.f32 %v446, %v461
  %v467 = vmul.f32 %v447, %v461
  %v468 = vmul.f32 %v448, %v461
  %v469 = vmul.f32 %v449, %v461
  %v470 = vmul.f32 %v450, %v461
  %v471 = vmul.f32 %v451, %v461
  %v472 = vmul.f32 %v452, %v461
  %v473 = vmul.f32 %v453, %v461
  %v474 = vmul.f32 %v454, %v461
  %v475 = vmul.f32 %v455, %v461
  %v476 = vmul.f32 %v456, %v461
  %v477 = vmul.f32 %v457, %v461
  %v478 = vlaneseq
  %v479 = vshrl.u32 %v478, 7
  %v480 = vsub.s32 2, %v479
  %v481 = vrot.slane %v33, %v480
  %v482 = vadd.f32 %v462, %v481
  %v483 = vadd.f32 %v463, %v481
  %v484 = vadd.f32 %v464, %v481
  %v485 = vadd.f32 %v465, %v481
  %v486 = vadd.f32 %v466, %v481
  %v487 = vadd.f32 %v467, %v481
  %v488 = vadd.f32 %v468, %v481
  %v489 = vadd.f32 %v469, %v481
  %v490 = vadd.f32 %v470, %v481
  %v491 = vadd.f32 %v471, %v481
  %v492 = vadd.f32 %v472, %v481
  %v493 = vadd.f32 %v473, %v481
  %v494 = vadd.f32 %v474, %v481
  %v495 = vadd.f32 %v475, %v481
  %v496 = vadd.f32 %v476, %v481
  %v497 = vadd.f32 %v477, %v481
  %v498 = vsel %vm248, %v482, 0.0
  %v499 = vsel %vm248, %v483, 0.0
  %v500 = vadd.f32 %v498, %v499
  %v501 = vrot.slane %v500, 4
  %v502 = vadd.f32 %v500, %v501
  %v503 = vrot.slane %v502, 2
  %v504 = vadd.f32 %v502, %v503
  %v505 = vrot.slane %v504, 1
  %v506 = vadd.f32 %v504, %v505
  %v507 = vsel %vm248, %v484, 0.0
  %v508 = vsel %vm248, %v485, 0.0
  %v509 = vadd.f32 %v507, %v508
  %v510 = vrot.slane %v509, 4
  %v511 = vadd.f32 %v509, %v510
  %v512 = vrot.slane %v511, 2
  %v513 = vadd.f32 %v511, %v512
  %v514 = vrot.slane %v513, 1
  %v515 = vadd.f32 %v513, %v514
  %v516 = vsel %vm248, %v486, 0.0
  %v517 = vsel %vm248, %v487, 0.0
  %v518 = vadd.f32 %v516, %v517
  %v519 = vrot.slane %v518, 4
  %v520 = vadd.f32 %v518, %v519
  %v521 = vrot.slane %v520, 2
  %v522 = vadd.f32 %v520, %v521
  %v523 = vrot.slane %v522, 1
  %v524 = vadd.f32 %v522, %v523
  %v525 = vsel %vm248, %v488, 0.0
  %v526 = vsel %vm248, %v489, 0.0
  %v527 = vadd.f32 %v525, %v526
  %v528 = vrot.slane %v527, 4
  %v529 = vadd.f32 %v527, %v528
  %v530 = vrot.slane %v529, 2
  %v531 = vadd.f32 %v529, %v530
  %v532 = vrot.slane %v531, 1
  %v533 = vadd.f32 %v531, %v532
  %v534 = vsel %vm248, %v490, 0.0
  %v535 = vsel %vm248, %v491, 0.0
  %v536 = vadd.f32 %v534, %v535
  %v537 = vrot.slane %v536, 4
  %v538 = vadd.f32 %v536, %v537
  %v539 = vrot.slane %v538, 2
  %v540 = vadd.f32 %v538, %v539
  %v541 = vrot.slane %v540, 1
  %v542 = vadd.f32 %v540, %v541
  %v543 = vsel %vm248, %v492, 0.0
  %v544 = vsel %vm248, %v493, 0.0
  %v545 = vadd.f32 %v543, %v544
  %v546 = vrot.slane %v545, 4
  %v547 = vadd.f32 %v545, %v546
  %v548 = vrot.slane %v547, 2
  %v549 = vadd.f32 %v547, %v548
  %v550 = vrot.slane %v549, 1
  %v551 = vadd.f32 %v549, %v550
  %v552 = vsel %vm248, %v494, 0.0
  %v553 = vsel %vm248, %v495, 0.0
  %v554 = vadd.f32 %v552, %v553
  %v555 = vrot.slane %v554, 4
  %v556 = vadd.f32 %v554, %v555
  %v557 = vrot.slane %v556, 2
  %v558 = vadd.f32 %v556, %v557
  %v559 = vrot.slane %v558, 1
  %v560 = vadd.f32 %v558, %v559
  %v561 = vsel %vm248, %v496, 0.0
  %v562 = vsel %vm248, %v497, 0.0
  %v563 = vadd.f32 %v561, %v562
  %v564 = vrot.slane %v563, 4
  %v565 = vadd.f32 %v563, %v564
  %v566 = vrot.slane %v565, 2
  %v567 = vadd.f32 %v565, %v566
  %v568 = vrot.slane %v567, 1
  %v569 = vadd.f32 %v567, %v568
  %v570 = vrcp.pop 16.0
  %v571 = vmul.f32 %v506, %v570
  %v572 = vmul.f32 %v515, %v570
  %v573 = vmul.f32 %v524, %v570
  %v574 = vmul.f32 %v533, %v570
  %v575 = vmul.f32 %v542, %v570
  %v576 = vmul.f32 %v551, %v570
  %v577 = vmul.f32 %v560, %v570
  %v578 = vmul.f32 %v569, %v570
  %v579 = vsel %vm248, %v482, -inf
  %v580 = vsel %vm248, %v483, -inf
  %v581 = vmax.f32 %v579, %v580
  %v582 = vrot.slane %v581, 4
  %v583 = vmax.f32 %v581, %v582
  %v584 = vrot.slane %v583, 2
  %v585 = vmax.f32 %v583, %v584
  %v586 = vrot.slane %v585, 1
  %v587 = vmax.f32 %v585, %v586
  %v588 = vsel %vm248, %v484, -inf
  %v589 = vsel %vm248, %v485, -inf
  %v590 = vmax.f32 %v588, %v589
  %v591 = vrot.slane %v590, 4
  %v592 = vmax.f32 %v590, %v591
  %v593 = vrot.slane %v592, 2
  %v594 = vmax.f32 %v592, %v593
  %v595 = vrot.slane %v594, 1
  %v596 = vmax.f32 %v594, %v595
  %v597 = vsel %vm248, %v486, -inf
  %v598 = vsel %vm248, %v487, -inf
  %v599 = vmax.f32 %v597, %v598
  %v600 = vrot.slane %v599, 4
  %v601 = vmax.f32 %v599, %v600
  %v602 = vrot.slane %v601, 2
  %v603 = vmax.f32 %v601, %v602
  %v604 = vrot.slane %v603, 1
  %v605 = vmax.f32 %v603, %v604
  %v606 = vsel %vm248, %v488, -inf
  %v607 = vsel %vm248, %v489, -inf
  %v608 = vmax.f32 %v606, %v607
  %v609 = vrot.slane %v608, 4
  %v610 = vmax.f32 %v608, %v609
  %v611 = vrot.slane %v610, 2
  %v612 = vmax.f32 %v610, %v611
  %v613 = vrot.slane %v612, 1
  %v614 = vmax.f32 %v612, %v613
  %v615 = vsel %vm248, %v490, -inf
  %v616 = vsel %vm248, %v491, -inf
  %v617 = vmax.f32 %v615, %v616
  %v618 = vrot.slane %v617, 4
  %v619 = vmax.f32 %v617, %v618
  %v620 = vrot.slane %v619, 2
  %v621 = vmax.f32 %v619, %v620
  %v622 = vrot.slane %v621, 1
  %v623 = vmax.f32 %v621, %v622
  %v624 = vsel %vm248, %v492, -inf
  %v625 = vsel %vm248, %v493, -inf
  %v626 = vmax.f32 %v624, %v625
  %v627 = vrot.slane %v626, 4
  %v628 = vmax.f32 %v626, %v627
  %v629 = vrot.slane %v628, 2
  %v630 = vmax.f32 %v628, %v629
  %v631 = vrot.slane %v630, 1
  %v632 = vmax.f32 %v630, %v631
  %v633 = vsel %vm248, %v494, -inf
  %v634 = vsel %vm248, %v495, -inf
  %v635 = vmax.f32 %v633, %v634
  %v636 = vrot.slane %v635, 4
  %v637 = vmax.f32 %v635, %v636
  %v638 = vrot.slane %v637, 2
  %v639 = vmax.f32 %v637, %v638
  %v640 = vrot.slane %v639, 1
  %v641 = vmax.f32 %v639, %v640
  %v642 = vsel %vm248, %v496, -inf
  %v643 = vsel %vm248, %v497, -inf
  %v644 = vmax.f32 %v642, %v643
  %v645 = vrot.slane %v644, 4
  %v646 = vmax.f32 %v644, %v645
  %v647 = vrot.slane %v646, 2
  %v648 = vmax.f32 %v646, %v647
  %v649 = vrot.slane %v648, 1
  %v650 = vmax.f32 %v648, %v649
  %vm659 = vcmask 1041409
  %v660 = vsel %vm659, %v572, %v571
  %vm661 = vcmask 1042434
  %v662 = vsel %vm661, %v573, %v660
  %vm663 = vcmask 1043459
  %v664 = vsel %vm663, %v574, %v662
  %vm665 = vcmask 1044484
  %v666 = vsel %vm665, %v575, %v664
  %vm667 = vcmask 1045509
  %v668 = vsel %vm667, %v576, %v666
  %vm669 = vcmask 1046534
  %v670 = vsel %vm669, %v577, %v668
  %vm671 = vcmask 1047559
  %v672 = vsel %vm671, %v578, %v670
  %v682 = vsel %vm659, %v596, %v587
  %v683 = vsel %vm661, %v605, %v682
  %v684 = vsel %vm663, %v614, %v683
  %v685 = vsel %vm665, %v623, %v684
  %v686 = vsel %vm667, %v632, %v685
  %v687 = vsel %vm669, %v641, %v686
  %v688 = vsel %vm671, %v650, %v687
  %v690 = vpack.c.bf16 %v688, %v672
  %v691 = vld [vmem:[%s3] sm:$0xf]
  %v692 = vld [vmem:[%s3 + $0x4] sm:$0xf]
  %v693 = vld [vmem:[%s3 + $0x8] sm:$0xf]
  %v694 = vld [vmem:[%s3 + $0xc] sm:$0xf]
  %v699 = vunpack.c.l.b16 %v691
  %v700 = vunpack.c.l.b16 %v692
  %v701 = vunpack.c.l.b16 %v693
  %v702 = vunpack.c.l.b16 %v694
  %v703 = vpack.c.b16 %v700, %v699
  %v704 = vpack.c.b16 %v702, %v701
  %v708 = vsel %vm248, %v690, 0
  %710 = vmatprep.subr.bf16.mxu0 0
  %711 = vmatpush1.bf16.msra.mxu0 0
  %712 = vmatprep.subr.bf16.mxu0 0
  %713 = vmatpush1.bf16.msra.mxu0 0
  %714 = vmatprep.subr.bf16.mxu0 0
  %715 = vmatpush1.bf16.msra.mxu0 0
  %716 = vmatprep.subr.bf16.mxu0 0
  %717 = vmatpush1.bf16.msra.mxu0 0
  %718 = vmatprep.subr.bf16.mxu0 0
  %719 = vmatpush1.bf16.msra.mxu0 0
  %720 = vmatprep.subr.bf16.mxu0 0
  %721 = vmatpush1.bf16.msra.mxu0 0
  %722 = vmatprep.subr.bf16.mxu0 0
  %723 = vmatpush1.bf16.msra.mxu0 %v704
  %724 = vmatprep.subr.bf16.mxu0 0
  %725 = vmatpush1.bf16.msra.mxu0 %v703
  %726 = vmatprep.subr.bf16.mxu0 0
  %727 = vmatpush2.bf16.msra.mxu0 0
  %728 = vmatprep.subr.bf16.mxu0 0
  %729 = vmatpush2.bf16.msra.mxu0 0
  %730 = vmatprep.subr.bf16.mxu0 0
  %731 = vmatpush2.bf16.msra.mxu0 0
  %732 = vmatprep.subr.bf16.mxu0 0
  %733 = vmatpush2.bf16.msra.mxu0 0
  %734 = vmatprep.subr.bf16.mxu0 0
  %735 = vmatpush2.bf16.msra.mxu0 0
  %736 = vmatprep.subr.bf16.mxu0 0
  %737 = vmatpush2.bf16.msra.mxu0 0
  %738 = vmatprep.subr.bf16.mxu0 0
  %739 = vmatpush2.bf16.msra.mxu0 0
  %740 = vmatprep.subr.bf16.mxu0 0
  %741 = vmatpush2.bf16.msra.mxu0 0
  %742 = vmatprep.mubr.bf16.mxu0 0
  %743 = vmatmul.mubr.bf16.gmra.mxu0 %v708
  %v744 = vpop.f32.mrf.mxu0
  %v745 = vadd.f32 0.0, %v744
  %v746 = vpop.f32.mrf.mxu0
  %v747 = vpop.f32.mrf.mxu0
  %v748 = vadd.f32 0.0, %v747
  %v749 = vpop.f32.mrf.mxu0
  %750 = vdwg.mxu0
  %v751 = vmax.f32 %v745, 0.0
  %v752 = vmax.f32 %v748, 0.0
  %v753 = vadd.f32 %v751, %v752
  %v754 = vpack.c.bf16 %v753, %v753
  %v755 = vld [vmem:[%s4] sm:$0xf]
  %vm756 = vcmask 64512
  %v758 = vsel %vm756, %v754, 0
  %vm760 = vcmask 1043456
  %v762 = vsel %vm760, %v755, 0
  %764 = vmatprep.subr.bf16.mxu0 0
  %765 = vmatpush1.bf16.msra.mxu0 0
  %766 = vmatprep.subr.bf16.mxu0 0
  %767 = vmatpush1.bf16.msra.mxu0 0
  %768 = vmatprep.subr.bf16.mxu0 0
  %769 = vmatpush1.bf16.msra.mxu0 0
  %770 = vmatprep.subr.bf16.mxu0 0
  %771 = vmatpush1.bf16.msra.mxu0 0
  %772 = vmatprep.subr.bf16.mxu0 0
  %773 = vmatpush1.bf16.msra.mxu0 0
  %774 = vmatprep.subr.bf16.mxu0 0
  %775 = vmatpush1.bf16.msra.mxu0 0
  %776 = vmatprep.subr.bf16.mxu0 0
  %777 = vmatpush1.bf16.msra.mxu0 0
  %778 = vmatprep.subr.bf16.mxu0 0
  %779 = vmatpush1.bf16.msra.mxu0 %v762
  %780 = vmatprep.subr.bf16.mxu0 0
  %781 = vmatpush2.bf16.msra.mxu0 0
  %782 = vmatprep.subr.bf16.mxu0 0
  %783 = vmatpush2.bf16.msra.mxu0 0
  %784 = vmatprep.subr.bf16.mxu0 0
  %785 = vmatpush2.bf16.msra.mxu0 0
  %786 = vmatprep.subr.bf16.mxu0 0
  %787 = vmatpush2.bf16.msra.mxu0 0
  %788 = vmatprep.subr.bf16.mxu0 0
  %789 = vmatpush2.bf16.msra.mxu0 0
  %790 = vmatprep.subr.bf16.mxu0 0
  %791 = vmatpush2.bf16.msra.mxu0 0
  %792 = vmatprep.subr.bf16.mxu0 0
  %793 = vmatpush2.bf16.msra.mxu0 0
  %794 = vmatprep.subr.bf16.mxu0 0
  %795 = vmatpush2.bf16.msra.mxu0 0
  %796 = vmatprep.mubr.bf16.mxu0 0
  %797 = vmatmul.mubr.bf16.gmra.mxu0 %v758
  %v798 = vpop.f32.mrf.mxu0
  %v799 = vadd.f32 0.0, %v798
  %v800 = vpop.f32.mrf.mxu0
  %v801 = vpop.f32.mrf.mxu0
  %v802 = vpop.f32.mrf.mxu0
  %803 = vdwg.mxu0
  %v804 = vxor.u32 %v799, 2147483648
  %v805 = vmul.f32 %v804, 1.442695
  %v806 = vpow.pop %v805
  %v807 = vadd.f32 %v806, 1.0
  %v808 = vrcp.pop %v807
  %v809 = vmul.f32 1.0, %v808
  %v811 = vcombine.high %v809, %v809
  %v813 = vunpack.c.l.s4 1966171168
  %v814 = vunpack.c.0.s8 %v813
  %v815 = vlaneseq
  %v816 = vshrl.u32 %v815, 7
  %v817 = vsub.s32 %v814, %v816
  %v818 = vrot.slane %v809, %v817
  %v820 = vunpack.c.l.s4 1966171168
  %v821 = vunpack.c.0.s8 %v820
  %v822 = vlaneseq
  %v823 = vshrl.u32 %v822, 7
  %v824 = vsub.s32 %v821, %v823
  %v825 = vrot.slane %v811, %v824
  %v826 = vcombine.high %v818, %v818
  %v827 = vcombine.high %v825, %v825
  %v829 = vunpack.c.l.s4 1966171168
  %v830 = vunpack.c.0.s8 %v829
  %v831 = vlaneseq
  %v832 = vshrl.u32 %v831, 7
  %v833 = vsub.s32 %v830, %v832
  %v834 = vrot.slane %v818, %v833
  %v836 = vunpack.c.l.s4 1966171168
  %v837 = vunpack.c.0.s8 %v836
  %v838 = vlaneseq
  %v839 = vshrl.u32 %v838, 7
  %v840 = vsub.s32 %v837, %v839
  %v841 = vrot.slane %v825, %v840
  %v843 = vunpack.c.l.s4 1966171168
  %v844 = vunpack.c.0.s8 %v843
  %v845 = vlaneseq
  %v846 = vshrl.u32 %v845, 7
  %v847 = vsub.s32 %v844, %v846
  %v848 = vrot.slane %v826, %v847
  %v850 = vunpack.c.l.s4 1966171168
  %v851 = vunpack.c.0.s8 %v850
  %v852 = vlaneseq
  %v853 = vshrl.u32 %v852, 7
  %v854 = vsub.s32 %v851, %v853
  %v855 = vrot.slane %v827, %v854
  %v856 = vcombine.high %v834, %v834
  %v857 = vcombine.high %v841, %v841
  %v858 = vcombine.high %v848, %v848
  %v859 = vcombine.high %v855, %v855
  %v860 = vlaneseq
  %v861 = vshrl.u32 %v860, 7
  %v862 = vsub.s32 0, %v861
  %v863 = vrot.slane %v834, %v862
  %v864 = vlaneseq
  %v865 = vshrl.u32 %v864, 7
  %v866 = vsub.s32 0, %v865
  %v867 = vrot.slane %v848, %v866
  %v868 = vlaneseq
  %v869 = vshrl.u32 %v868, 7
  %v870 = vsub.s32 0, %v869
  %v871 = vrot.slane %v856, %v870
  %v872 = vlaneseq
  %v873 = vshrl.u32 %v872, 7
  %v874 = vsub.s32 0, %v873
  %v875 = vrot.slane %v858, %v874
  %v876 = vlaneseq
  %v877 = vshrl.u32 %v876, 7
  %v878 = vsub.s32 0, %v877
  %v879 = vrot.slane %v841, %v878
  %v880 = vlaneseq
  %v881 = vshrl.u32 %v880, 7
  %v882 = vsub.s32 0, %v881
  %v883 = vrot.slane %v855, %v882
  %v884 = vlaneseq
  %v885 = vshrl.u32 %v884, 7
  %v886 = vsub.s32 0, %v885
  %v887 = vrot.slane %v857, %v886
  %v888 = vlaneseq
  %v889 = vshrl.u32 %v888, 7
  %v890 = vsub.s32 0, %v889
  %v891 = vrot.slane %v859, %v890
  %v900 = vmul.f32 %v482, %v863
  %v901 = vmul.f32 %v483, %v863
  %v902 = vmul.f32 %v484, %v867
  %v903 = vmul.f32 %v485, %v867
  %v904 = vmul.f32 %v486, %v871
  %v905 = vmul.f32 %v487, %v871
  %v906 = vmul.f32 %v488, %v875
  %v907 = vmul.f32 %v489, %v875
  %v908 = vmul.f32 %v490, %v879
  %v909 = vmul.f32 %v491, %v879
  %v910 = vmul.f32 %v492, %v883
  %v911 = vmul.f32 %v493, %v883
  %v912 = vmul.f32 %v494, %v887
  %v913 = vmul.f32 %v495, %v887
  %v914 = vmul.f32 %v496, %v891
  %v915 = vmul.f32 %v497, %v891
  %v916 = vsel %vm248, %v900, 0.0
  %917 = vadd.xlane.f32.xlu0 %v916
  %v918 = vpop.xlane.xlu0 %917
  %v919 = vsel %vm248, %v901, 0.0
  %920 = vadd.xlane.f32.xlu0 %v919
  %v921 = vpop.xlane.xlu0 %920
  %v922 = vsel %vm248, %v902, 0.0
  %923 = vadd.xlane.f32.xlu0 %v922
  %v924 = vpop.xlane.xlu0 %923
  %v925 = vsel %vm248, %v903, 0.0
  %926 = vadd.xlane.f32.xlu0 %v925
  %v927 = vpop.xlane.xlu0 %926
  %v928 = vsel %vm248, %v904, 0.0
  %929 = vadd.xlane.f32.xlu0 %v928
  %v930 = vpop.xlane.xlu0 %929
  %v931 = vsel %vm248, %v905, 0.0
  %932 = vadd.xlane.f32.xlu0 %v931
  %v933 = vpop.xlane.xlu0 %932
  %v934 = vsel %vm248, %v906, 0.0
  %935 = vadd.xlane.f32.xlu0 %v934
  %v936 = vpop.xlane.xlu0 %935
  %v937 = vsel %vm248, %v907, 0.0
  %938 = vadd.xlane.f32.xlu0 %v937
  %v939 = vpop.xlane.xlu0 %938
  %v940 = vsel %vm248, %v908, 0.0
  %941 = vadd.xlane.f32.xlu0 %v940
  %v942 = vpop.xlane.xlu0 %941
  %v943 = vsel %vm248, %v909, 0.0
  %944 = vadd.xlane.f32.xlu0 %v943
  %v945 = vpop.xlane.xlu0 %944
  %v946 = vsel %vm248, %v910, 0.0
  %947 = vadd.xlane.f32.xlu0 %v946
  %v948 = vpop.xlane.xlu0 %947
  %v949 = vsel %vm248, %v911, 0.0
  %950 = vadd.xlane.f32.xlu0 %v949
  %v951 = vpop.xlane.xlu0 %950
  %v952 = vsel %vm248, %v912, 0.0
  %953 = vadd.xlane.f32.xlu0 %v952
  %v954 = vpop.xlane.xlu0 %953
  %v955 = vsel %vm248, %v913, 0.0
  %956 = vadd.xlane.f32.xlu0 %v955
  %v957 = vpop.xlane.xlu0 %956
  %v958 = vsel %vm248, %v914, 0.0
  %959 = vadd.xlane.f32.xlu0 %v958
  %v960 = vpop.xlane.xlu0 %959
  %v961 = vsel %vm248, %v915, 0.0
  %962 = vadd.xlane.f32.xlu0 %v961
  %v963 = vpop.xlane.xlu0 %962
  %v964 = vmul.f32 %v918, %v297
  %v965 = vmul.f32 %v921, %v297
  %v966 = vmul.f32 %v924, %v297
  %v967 = vmul.f32 %v927, %v297
  %v968 = vmul.f32 %v930, %v297
  %v969 = vmul.f32 %v933, %v297
  %v970 = vmul.f32 %v936, %v297
  %v971 = vmul.f32 %v939, %v297
  %v972 = vmul.f32 %v942, %v297
  %v973 = vmul.f32 %v945, %v297
  %v974 = vmul.f32 %v948, %v297
  %v975 = vmul.f32 %v951, %v297
  %v976 = vmul.f32 %v954, %v297
  %v977 = vmul.f32 %v957, %v297
  %v978 = vmul.f32 %v960, %v297
  %v979 = vmul.f32 %v963, %v297
  %v980 = vsel %vm248, %v900, -inf
  %981 = vmax.xlane.f32.xlu0 %v980
  %v982 = vpop.xlane.xlu0 %981
  %v983 = vsel %vm248, %v901, -inf
  %984 = vmax.xlane.f32.xlu0 %v983
  %v985 = vpop.xlane.xlu0 %984
  %v986 = vsel %vm248, %v902, -inf
  %987 = vmax.xlane.f32.xlu0 %v986
  %v988 = vpop.xlane.xlu0 %987
  %v989 = vsel %vm248, %v903, -inf
  %990 = vmax.xlane.f32.xlu0 %v989
  %v991 = vpop.xlane.xlu0 %990
  %v992 = vsel %vm248, %v904, -inf
  %993 = vmax.xlane.f32.xlu0 %v992
  %v994 = vpop.xlane.xlu0 %993
  %v995 = vsel %vm248, %v905, -inf
  %996 = vmax.xlane.f32.xlu0 %v995
  %v997 = vpop.xlane.xlu0 %996
  %v998 = vsel %vm248, %v906, -inf
  %999 = vmax.xlane.f32.xlu0 %v998
  %v1000 = vpop.xlane.xlu0 %999
  %v1001 = vsel %vm248, %v907, -inf
  %1002 = vmax.xlane.f32.xlu0 %v1001
  %v1003 = vpop.xlane.xlu0 %1002
  %v1004 = vsel %vm248, %v908, -inf
  %1005 = vmax.xlane.f32.xlu0 %v1004
  %v1006 = vpop.xlane.xlu0 %1005
  %v1007 = vsel %vm248, %v909, -inf
  %1008 = vmax.xlane.f32.xlu0 %v1007
  %v1009 = vpop.xlane.xlu0 %1008
  %v1010 = vsel %vm248, %v910, -inf
  %1011 = vmax.xlane.f32.xlu0 %v1010
  %v1012 = vpop.xlane.xlu0 %1011
  %v1013 = vsel %vm248, %v911, -inf
  %1014 = vmax.xlane.f32.xlu0 %v1013
  %v1015 = vpop.xlane.xlu0 %1014
  %v1016 = vsel %vm248, %v912, -inf
  %1017 = vmax.xlane.f32.xlu0 %v1016
  %v1018 = vpop.xlane.xlu0 %1017
  %v1019 = vsel %vm248, %v913, -inf
  %1020 = vmax.xlane.f32.xlu0 %v1019
  %v1021 = vpop.xlane.xlu0 %1020
  %v1022 = vsel %vm248, %v914, -inf
  %1023 = vmax.xlane.f32.xlu0 %v1022
  %v1024 = vpop.xlane.xlu0 %1023
  %v1025 = vsel %vm248, %v915, -inf
  %1026 = vmax.xlane.f32.xlu0 %v1025
  %v1027 = vpop.xlane.xlu0 %1026
  %v1044 = vlaneseq
  %v1045 = vand.u32 %v1044, 127
  %v1046 = vlaneseq
  %v1047 = vshrl.u32 %v1046, 7
  %v1048 = vsub.s32 %v1045, %v1047
  %v1049 = vrot.slane %v964, %v1048
  %v1050 = vadd.s32 %v1045, 4294967288
  %v1051 = vlaneseq
  %v1052 = vshrl.u32 %v1051, 7
  %v1053 = vsub.s32 %v1050, %v1052
  %v1054 = vrot.slane %v965, %v1053
  %vm1055 = vcmask 130112
  %v1056 = vsel %vm1055, %v1054, %v1049
  %v1057 = vlaneseq
  %v1058 = vshrl.u32 %v1057, 7
  %v1059 = vsub.s32 %v1045, %v1058
  %v1060 = vrot.slane %v966, %v1059
  %v1061 = vlaneseq
  %v1062 = vshrl.u32 %v1061, 7
  %v1063 = vsub.s32 %v1050, %v1062
  %v1064 = vrot.slane %v967, %v1063
  %v1065 = vsel %vm1055, %v1064, %v1060
  %v1066 = vlaneseq
  %v1067 = vshrl.u32 %v1066, 7
  %v1068 = vsub.s32 %v1045, %v1067
  %v1069 = vrot.slane %v968, %v1068
  %v1070 = vlaneseq
  %v1071 = vshrl.u32 %v1070, 7
  %v1072 = vsub.s32 %v1050, %v1071
  %v1073 = vrot.slane %v969, %v1072
  %v1074 = vsel %vm1055, %v1073, %v1069
  %v1075 = vlaneseq
  %v1076 = vshrl.u32 %v1075, 7
  %v1077 = vsub.s32 %v1045, %v1076
  %v1078 = vrot.slane %v970, %v1077
  %v1079 = vlaneseq
  %v1080 = vshrl.u32 %v1079, 7
  %v1081 = vsub.s32 %v1050, %v1080
  %v1082 = vrot.slane %v971, %v1081
  %v1083 = vsel %vm1055, %v1082, %v1078
  %v1084 = vlaneseq
  %v1085 = vshrl.u32 %v1084, 7
  %v1086 = vsub.s32 %v1045, %v1085
  %v1087 = vrot.slane %v972, %v1086
  %v1088 = vlaneseq
  %v1089 = vshrl.u32 %v1088, 7
  %v1090 = vsub.s32 %v1050, %v1089
  %v1091 = vrot.slane %v973, %v1090
  %v1092 = vsel %vm1055, %v1091, %v1087
  %v1093 = vlaneseq
  %v1094 = vshrl.u32 %v1093, 7
  %v1095 = vsub.s32 %v1045, %v1094
  %v1096 = vrot.slane %v974, %v1095
  %v1097 = vlaneseq
  %v1098 = vshrl.u32 %v1097, 7
  %v1099 = vsub.s32 %v1050, %v1098
  %v1100 = vrot.slane %v975, %v1099
  %v1101 = vsel %vm1055, %v1100, %v1096
  %v1102 = vlaneseq
  %v1103 = vshrl.u32 %v1102, 7
  %v1104 = vsub.s32 %v1045, %v1103
  %v1105 = vrot.slane %v976, %v1104
  %v1106 = vlaneseq
  %v1107 = vshrl.u32 %v1106, 7
  %v1108 = vsub.s32 %v1050, %v1107
  %v1109 = vrot.slane %v977, %v1108
  %v1110 = vsel %vm1055, %v1109, %v1105
  %v1111 = vlaneseq
  %v1112 = vshrl.u32 %v1111, 7
  %v1113 = vsub.s32 %v1045, %v1112
  %v1114 = vrot.slane %v978, %v1113
  %v1115 = vlaneseq
  %v1116 = vshrl.u32 %v1115, 7
  %v1117 = vsub.s32 %v1050, %v1116
  %v1118 = vrot.slane %v979, %v1117
  %v1119 = vsel %vm1055, %v1118, %v1114
  %v1120 = vsel %vm659, %v1065, %v1056
  %v1121 = vsel %vm661, %v1074, %v1120
  %v1122 = vsel %vm663, %v1083, %v1121
  %v1123 = vsel %vm665, %v1092, %v1122
  %v1124 = vsel %vm667, %v1101, %v1123
  %v1125 = vsel %vm669, %v1110, %v1124
  %v1126 = vsel %vm671, %v1119, %v1125
  %v1144 = vlaneseq
  %v1145 = vshrl.u32 %v1144, 7
  %v1146 = vsub.s32 %v1045, %v1145
  %v1147 = vrot.slane %v982, %v1146
  %v1148 = vlaneseq
  %v1149 = vshrl.u32 %v1148, 7
  %v1150 = vsub.s32 %v1050, %v1149
  %v1151 = vrot.slane %v985, %v1150
  %v1152 = vsel %vm1055, %v1151, %v1147
  %v1153 = vlaneseq
  %v1154 = vshrl.u32 %v1153, 7
  %v1155 = vsub.s32 %v1045, %v1154
  %v1156 = vrot.slane %v988, %v1155
  %v1157 = vlaneseq
  %v1158 = vshrl.u32 %v1157, 7
  %v1159 = vsub.s32 %v1050, %v1158
  %v1160 = vrot.slane %v991, %v1159
  %v1161 = vsel %vm1055, %v1160, %v1156
  %v1162 = vlaneseq
  %v1163 = vshrl.u32 %v1162, 7
  %v1164 = vsub.s32 %v1045, %v1163
  %v1165 = vrot.slane %v994, %v1164
  %v1166 = vlaneseq
  %v1167 = vshrl.u32 %v1166, 7
  %v1168 = vsub.s32 %v1050, %v1167
  %v1169 = vrot.slane %v997, %v1168
  %v1170 = vsel %vm1055, %v1169, %v1165
  %v1171 = vlaneseq
  %v1172 = vshrl.u32 %v1171, 7
  %v1173 = vsub.s32 %v1045, %v1172
  %v1174 = vrot.slane %v1000, %v1173
  %v1175 = vlaneseq
  %v1176 = vshrl.u32 %v1175, 7
  %v1177 = vsub.s32 %v1050, %v1176
  %v1178 = vrot.slane %v1003, %v1177
  %v1179 = vsel %vm1055, %v1178, %v1174
  %v1180 = vlaneseq
  %v1181 = vshrl.u32 %v1180, 7
  %v1182 = vsub.s32 %v1045, %v1181
  %v1183 = vrot.slane %v1006, %v1182
  %v1184 = vlaneseq
  %v1185 = vshrl.u32 %v1184, 7
  %v1186 = vsub.s32 %v1050, %v1185
  %v1187 = vrot.slane %v1009, %v1186
  %v1188 = vsel %vm1055, %v1187, %v1183
  %v1189 = vlaneseq
  %v1190 = vshrl.u32 %v1189, 7
  %v1191 = vsub.s32 %v1045, %v1190
  %v1192 = vrot.slane %v1012, %v1191
  %v1193 = vlaneseq
  %v1194 = vshrl.u32 %v1193, 7
  %v1195 = vsub.s32 %v1050, %v1194
  %v1196 = vrot.slane %v1015, %v1195
  %v1197 = vsel %vm1055, %v1196, %v1192
  %v1198 = vlaneseq
  %v1199 = vshrl.u32 %v1198, 7
  %v1200 = vsub.s32 %v1045, %v1199
  %v1201 = vrot.slane %v1018, %v1200
  %v1202 = vlaneseq
  %v1203 = vshrl.u32 %v1202, 7
  %v1204 = vsub.s32 %v1050, %v1203
  %v1205 = vrot.slane %v1021, %v1204
  %v1206 = vsel %vm1055, %v1205, %v1201
  %v1207 = vlaneseq
  %v1208 = vshrl.u32 %v1207, 7
  %v1209 = vsub.s32 %v1045, %v1208
  %v1210 = vrot.slane %v1024, %v1209
  %v1211 = vlaneseq
  %v1212 = vshrl.u32 %v1211, 7
  %v1213 = vsub.s32 %v1050, %v1212
  %v1214 = vrot.slane %v1027, %v1213
  %v1215 = vsel %vm1055, %v1214, %v1210
  %v1216 = vsel %vm659, %v1161, %v1152
  %v1217 = vsel %vm661, %v1170, %v1216
  %v1218 = vsel %vm663, %v1179, %v1217
  %v1219 = vsel %vm665, %v1188, %v1218
  %v1220 = vsel %vm667, %v1197, %v1219
  %v1221 = vsel %vm669, %v1206, %v1220
  %v1222 = vsel %vm671, %v1215, %v1221
  %v1224 = vpack.c.bf16 %v1222, %v1126
  %v1225 = vld [vmem:[%s5] sm:$0xf]
  %v1226 = vld [vmem:[%s5 + $0x4] sm:$0xf]
  %v1229 = vunpack.c.l.b16 %v1225
  %v1230 = vunpack.c.l.b16 %v1226
  %v1231 = vpack.c.b16 %v1230, %v1229
  %vm1233 = vcmask 130048
  %v1235 = vsel %vm1233, %v1224, 0
  %1237 = vmatprep.subr.bf16.mxu0 0
  %1238 = vmatpush1.bf16.msra.mxu0 0
  %1239 = vmatprep.subr.bf16.mxu0 0
  %1240 = vmatpush1.bf16.msra.mxu0 0
  %1241 = vmatprep.subr.bf16.mxu0 0
  %1242 = vmatpush1.bf16.msra.mxu0 0
  %1243 = vmatprep.subr.bf16.mxu0 0
  %1244 = vmatpush1.bf16.msra.mxu0 0
  %1245 = vmatprep.subr.bf16.mxu0 0
  %1246 = vmatpush1.bf16.msra.mxu0 0
  %1247 = vmatprep.subr.bf16.mxu0 0
  %1248 = vmatpush1.bf16.msra.mxu0 0
  %1249 = vmatprep.subr.bf16.mxu0 0
  %1250 = vmatpush1.bf16.msra.mxu0 0
  %1251 = vmatprep.subr.bf16.mxu0 0
  %1252 = vmatpush1.bf16.msra.mxu0 %v1231
  %1253 = vmatprep.subr.bf16.mxu0 0
  %1254 = vmatpush2.bf16.msra.mxu0 0
  %1255 = vmatprep.subr.bf16.mxu0 0
  %1256 = vmatpush2.bf16.msra.mxu0 0
  %1257 = vmatprep.subr.bf16.mxu0 0
  %1258 = vmatpush2.bf16.msra.mxu0 0
  %1259 = vmatprep.subr.bf16.mxu0 0
  %1260 = vmatpush2.bf16.msra.mxu0 0
  %1261 = vmatprep.subr.bf16.mxu0 0
  %1262 = vmatpush2.bf16.msra.mxu0 0
  %1263 = vmatprep.subr.bf16.mxu0 0
  %1264 = vmatpush2.bf16.msra.mxu0 0
  %1265 = vmatprep.subr.bf16.mxu0 0
  %1266 = vmatpush2.bf16.msra.mxu0 0
  %1267 = vmatprep.subr.bf16.mxu0 0
  %1268 = vmatpush2.bf16.msra.mxu0 0
  %1269 = vmatprep.mubr.bf16.mxu0 0
  %1270 = vmatmul.mubr.bf16.gmra.mxu0 %v1235
  %v1271 = vpop.f32.mrf.mxu0
  %v1272 = vadd.f32 0.0, %v1271
  %v1273 = vpop.f32.mrf.mxu0
  %v1274 = vpop.f32.mrf.mxu0
  %v1275 = vadd.f32 0.0, %v1274
  %v1276 = vpop.f32.mrf.mxu0
  %1277 = vdwg.mxu0
  %1279 = vrot.lane.b32.xlu0 %v1275, 112
  %v1280 = vpop.permute.xlu0 %1279
  %v1282 = vadd.f32 %v1272, %v1280
  %v1284 = vrot.slane %v33, 6
  %s1285 = vtos %v1284
  %v1286 = vstv %s1285
  %v1288 = vadd.f32 %v1282, %v1286
  %v1289 = vxor.u32 %v1288, 2147483648
  %v1290 = vmul.f32 %v1289, 1.442695
  %v1291 = vpow.pop %v1290
  %v1292 = vadd.f32 %v1291, 1.0
  %v1293 = vrcp.pop %v1292
  %v1294 = vmul.f32 1.0, %v1293
  %v1295 = vlaneseq
  %v1296 = vshrl.u32 %v1295, 7
  %v1297 = vsub.s32 0, %v1296
  %v1298 = vrot.slane %v1294, %v1297
  %1300 = vbcast.lane.b32.xlu0 %v1298, 256
  %v1301 = vpop.permute.xlu0 %1300
  %s1303 = sor.u32 256, 8
  %1304 = vbcast.lane.b32.xlu0 %v1298, %s1303
  %v1305 = vpop.permute.xlu0 %1304
  %v1306 = vlaneseq
  %v1307 = vshrl.u32 %v1306, 7
  %v1308 = vsub.s32 1, %v1307
  %v1309 = vrot.slane %v1294, %v1308
  %1311 = vbcast.lane.b32.xlu0 %v1309, 256
  %v1312 = vpop.permute.xlu0 %1311
  %s1314 = sor.u32 256, 8
  %1315 = vbcast.lane.b32.xlu0 %v1309, %s1314
  %v1316 = vpop.permute.xlu0 %1315
  %v1317 = vlaneseq
  %v1318 = vshrl.u32 %v1317, 7
  %v1319 = vsub.s32 2, %v1318
  %v1320 = vrot.slane %v1294, %v1319
  %1322 = vbcast.lane.b32.xlu0 %v1320, 256
  %v1323 = vpop.permute.xlu0 %1322
  %s1325 = sor.u32 256, 8
  %1326 = vbcast.lane.b32.xlu0 %v1320, %s1325
  %v1327 = vpop.permute.xlu0 %1326
  %v1328 = vlaneseq
  %v1329 = vshrl.u32 %v1328, 7
  %v1330 = vsub.s32 3, %v1329
  %v1331 = vrot.slane %v1294, %v1330
  %1333 = vbcast.lane.b32.xlu0 %v1331, 256
  %v1334 = vpop.permute.xlu0 %1333
  %s1336 = sor.u32 256, 8
  %1337 = vbcast.lane.b32.xlu0 %v1331, %s1336
  %v1338 = vpop.permute.xlu0 %1337
  %v1339 = vlaneseq
  %v1340 = vshrl.u32 %v1339, 7
  %v1341 = vsub.s32 4, %v1340
  %v1342 = vrot.slane %v1294, %v1341
  %1344 = vbcast.lane.b32.xlu0 %v1342, 256
  %v1345 = vpop.permute.xlu0 %1344
  %s1347 = sor.u32 256, 8
  %1348 = vbcast.lane.b32.xlu0 %v1342, %s1347
  %v1349 = vpop.permute.xlu0 %1348
  %v1350 = vlaneseq
  %v1351 = vshrl.u32 %v1350, 7
  %v1352 = vsub.s32 5, %v1351
  %v1353 = vrot.slane %v1294, %v1352
  %1355 = vbcast.lane.b32.xlu0 %v1353, 256
  %v1356 = vpop.permute.xlu0 %1355
  %s1358 = sor.u32 256, 8
  %1359 = vbcast.lane.b32.xlu0 %v1353, %s1358
  %v1360 = vpop.permute.xlu0 %1359
  %v1361 = vlaneseq
  %v1362 = vshrl.u32 %v1361, 7
  %v1363 = vsub.s32 6, %v1362
  %v1364 = vrot.slane %v1294, %v1363
  %1366 = vbcast.lane.b32.xlu0 %v1364, 256
  %v1367 = vpop.permute.xlu0 %1366
  %s1369 = sor.u32 256, 8
  %1370 = vbcast.lane.b32.xlu0 %v1364, %s1369
  %v1371 = vpop.permute.xlu0 %1370
  %v1372 = vlaneseq
  %v1373 = vshrl.u32 %v1372, 7
  %v1374 = vsub.s32 7, %v1373
  %v1375 = vrot.slane %v1294, %v1374
  %1377 = vbcast.lane.b32.xlu0 %v1375, 256
  %v1378 = vpop.permute.xlu0 %1377
  %s1380 = sor.u32 256, 8
  %1381 = vbcast.lane.b32.xlu0 %v1375, %s1380
  %v1382 = vpop.permute.xlu0 %1381
  %v1383 = vmul.f32 %v900, %v1301
  %v1384 = vmul.f32 %v901, %v1305
  %v1385 = vmul.f32 %v902, %v1312
  %v1386 = vmul.f32 %v903, %v1316
  %v1387 = vmul.f32 %v904, %v1323
  %v1388 = vmul.f32 %v905, %v1327
  %v1389 = vmul.f32 %v906, %v1334
  %v1390 = vmul.f32 %v907, %v1338
  %v1391 = vmul.f32 %v908, %v1345
  %v1392 = vmul.f32 %v909, %v1349
  %v1393 = vmul.f32 %v910, %v1356
  %v1394 = vmul.f32 %v911, %v1360
  %v1395 = vmul.f32 %v912, %v1367
  %v1396 = vmul.f32 %v913, %v1371
  %v1397 = vmul.f32 %v914, %v1378
  %v1398 = vmul.f32 %v915, %v1382
  %v1407 = vrot.slane %v1385, 7
  %v1408 = vsel %vm659, %v1407, %v1383
  %v1409 = vrot.slane %v1387, 6
  %v1410 = vsel %vm661, %v1409, %v1408
  %v1411 = vrot.slane %v1389, 5
  %v1412 = vsel %vm663, %v1411, %v1410
  %v1413 = vrot.slane %v1391, 4
  %v1414 = vsel %vm665, %v1413, %v1412
  %v1415 = vrot.slane %v1393, 3
  %v1416 = vsel %vm667, %v1415, %v1414
  %v1417 = vrot.slane %v1395, 2
  %v1418 = vsel %vm669, %v1417, %v1416
  %v1419 = vrot.slane %v1397, 1
  %v1420 = vsel %vm671, %v1419, %v1418
  %1422 = vst.msk [vmem:[#allocation2] sm:$0xff] %vm248, %v1420
  %v1423 = vrot.slane %v1383, 1
  %v1424 = vsel %vm659, %v1385, %v1423
  %v1425 = vrot.slane %v1387, 7
  %v1426 = vsel %vm661, %v1425, %v1424
  %v1427 = vrot.slane %v1389, 6
  %v1428 = vsel %vm663, %v1427, %v1426
  %v1429 = vrot.slane %v1391, 5
  %v1430 = vsel %vm665, %v1429, %v1428
  %v1431 = vrot.slane %v1393, 4
  %v1432 = vsel %vm667, %v1431, %v1430
  %v1433 = vrot.slane %v1395, 3
  %v1434 = vsel %vm669, %v1433, %v1432
  %v1435 = vrot.slane %v1397, 2
  %v1436 = vsel %vm671, %v1435, %v1434
  %1437 = vrot.lane.b32.xlu0 %v1436, 32
  %v1438 = vpop.permute.xlu0 %1437
  %vm1440 = vcmask 523520
  %1441 = vst.msk [vmem:[#allocation2] sm:$0xff] %vm1440, %v1438
  %v1442 = vrot.slane %v1383, 2
  %v1443 = vrot.slane %v1385, 1
  %v1444 = vsel %vm659, %v1443, %v1442
  %v1445 = vsel %vm661, %v1387, %v1444
  %v1446 = vrot.slane %v1389, 7
  %v1447 = vsel %vm663, %v1446, %v1445
  %v1448 = vrot.slane %v1391, 6
  %v1449 = vsel %vm665, %v1448, %v1447
  %v1450 = vrot.slane %v1393, 5
  %v1451 = vsel %vm667, %v1450, %v1449
  %v1452 = vrot.slane %v1395, 4
  %v1453 = vsel %vm669, %v1452, %v1451
  %v1454 = vrot.slane %v1397, 3
  %v1455 = vsel %vm671, %v1454, %v1453
  %1456 = vrot.lane.b32.xlu0 %v1455, 64
  %v1457 = vpop.permute.xlu0 %1456
  %vm1459 = vcmask 785920
  %1460 = vst.msk [vmem:[#allocation2] sm:$0xff] %vm1459, %v1457
  %v1461 = vrot.slane %v1383, 3
  %v1462 = vrot.slane %v1385, 2
  %v1463 = vsel %vm659, %v1462, %v1461
  %v1464 = vrot.slane %v1387, 1
  %v1465 = vsel %vm661, %v1464, %v1463
  %v1466 = vsel %vm663, %v1389, %v1465
  %v1467 = vrot.slane %v1391, 7
  %v1468 = vsel %vm665, %v1467, %v1466
  %v1469 = vrot.slane %v1393, 6
  %v1470 = vsel %vm667, %v1469, %v1468
  %v1471 = vrot.slane %v1395, 5
  %v1472 = vsel %vm669, %v1471, %v1470
  %v1473 = vrot.slane %v1397, 4
  %v1474 = vsel %vm671, %v1473, %v1472
  %1475 = vrot.lane.b32.xlu0 %v1474, 96
  %v1476 = vpop.permute.xlu0 %1475
  %vm1478 = vcmask 1048320
  %1479 = vst.msk [vmem:[#allocation2] sm:$0xff] %vm1478, %v1476
  %v1480 = vrot.slane %v1383, 4
  %v1481 = vrot.slane %v1385, 3
  %v1482 = vsel %vm659, %v1481, %v1480
  %v1483 = vrot.slane %v1387, 2
  %v1484 = vsel %vm661, %v1483, %v1482
  %v1485 = vrot.slane %v1389, 1
  %v1486 = vsel %vm663, %v1485, %v1484
  %v1487 = vsel %vm665, %v1391, %v1486
  %v1488 = vrot.slane %v1393, 7
  %v1489 = vsel %vm667, %v1488, %v1487
  %v1490 = vrot.slane %v1395, 6
  %v1491 = vsel %vm669, %v1490, %v1489
  %v1492 = vrot.slane %v1397, 5
  %v1493 = vsel %vm671, %v1492, %v1491
  %1495 = vst.msk [vmem:[#allocation2 + $0x8] sm:$0xff] %vm248, %v1493
  %v1496 = vrot.slane %v1383, 5
  %v1497 = vrot.slane %v1385, 4
  %v1498 = vsel %vm659, %v1497, %v1496
  %v1499 = vrot.slane %v1387, 3
  %v1500 = vsel %vm661, %v1499, %v1498
  %v1501 = vrot.slane %v1389, 2
  %v1502 = vsel %vm663, %v1501, %v1500
  %v1503 = vrot.slane %v1391, 1
  %v1504 = vsel %vm665, %v1503, %v1502
  %v1505 = vsel %vm667, %v1393, %v1504
  %v1506 = vrot.slane %v1395, 7
  %v1507 = vsel %vm669, %v1506, %v1505
  %v1508 = vrot.slane %v1397, 6
  %v1509 = vsel %vm671, %v1508, %v1507
  %1510 = vrot.lane.b32.xlu0 %v1509, 32
  %v1511 = vpop.permute.xlu0 %1510
  %1513 = vst.msk [vmem:[#allocation2 + $0x8] sm:$0xff] %vm1440, %v1511
  %v1514 = vrot.slane %v1383, 6
  %v1515 = vrot.slane %v1385, 5
  %v1516 = vsel %vm659, %v1515, %v1514
  %v1517 = vrot.slane %v1387, 4
  %v1518 = vsel %vm661, %v1517, %v1516
  %v1519 = vrot.slane %v1389, 3
  %v1520 = vsel %vm663, %v1519, %v1518
  %v1521 = vrot.slane %v1391, 2
  %v1522 = vsel %vm665, %v1521, %v1520
  %v1523 = vrot.slane %v1393, 1
  %v1524 = vsel %vm667, %v1523, %v1522
  %v1525 = vsel %vm669, %v1395, %v1524
  %v1526 = vrot.slane %v1397, 7
  %v1527 = vsel %vm671, %v1526, %v1525
  %1528 = vrot.lane.b32.xlu0 %v1527, 64
  %v1529 = vpop.permute.xlu0 %1528
  %1531 = vst.msk [vmem:[#allocation2 + $0x8] sm:$0xff] %vm1459, %v1529
  %v1532 = vrot.slane %v1383, 7
  %v1533 = vrot.slane %v1385, 6
  %v1534 = vsel %vm659, %v1533, %v1532
  %v1535 = vrot.slane %v1387, 5
  %v1536 = vsel %vm661, %v1535, %v1534
  %v1537 = vrot.slane %v1389, 4
  %v1538 = vsel %vm663, %v1537, %v1536
  %v1539 = vrot.slane %v1391, 3
  %v1540 = vsel %vm665, %v1539, %v1538
  %v1541 = vrot.slane %v1393, 2
  %v1542 = vsel %vm667, %v1541, %v1540
  %v1543 = vrot.slane %v1395, 1
  %v1544 = vsel %vm669, %v1543, %v1542
  %v1545 = vsel %vm671, %v1397, %v1544
  %1546 = vrot.lane.b32.xlu0 %v1545, 96
  %v1547 = vpop.permute.xlu0 %1546
  %1549 = vst.msk [vmem:[#allocation2 + $0x8] sm:$0xff] %vm1478, %v1547
  %v1558 = vrot.slane %v1386, 7
  %v1559 = vsel %vm659, %v1558, %v1384
  %v1560 = vrot.slane %v1388, 6
  %v1561 = vsel %vm661, %v1560, %v1559
  %v1562 = vrot.slane %v1390, 5
  %v1563 = vsel %vm663, %v1562, %v1561
  %v1564 = vrot.slane %v1392, 4
  %v1565 = vsel %vm665, %v1564, %v1563
  %v1566 = vrot.slane %v1394, 3
  %v1567 = vsel %vm667, %v1566, %v1565
  %v1568 = vrot.slane %v1396, 2
  %v1569 = vsel %vm669, %v1568, %v1567
  %v1570 = vrot.slane %v1398, 1
  %v1571 = vsel %vm671, %v1570, %v1569
  %1573 = vst.msk [vmem:[#allocation2 + $0x10] sm:$0xff] %vm248, %v1571
  %v1574 = vrot.slane %v1384, 1
  %v1575 = vsel %vm659, %v1386, %v1574
  %v1576 = vrot.slane %v1388, 7
  %v1577 = vsel %vm661, %v1576, %v1575
  %v1578 = vrot.slane %v1390, 6
  %v1579 = vsel %vm663, %v1578, %v1577
  %v1580 = vrot.slane %v1392, 5
  %v1581 = vsel %vm665, %v1580, %v1579
  %v1582 = vrot.slane %v1394, 4
  %v1583 = vsel %vm667, %v1582, %v1581
  %v1584 = vrot.slane %v1396, 3
  %v1585 = vsel %vm669, %v1584, %v1583
  %v1586 = vrot.slane %v1398, 2
  %v1587 = vsel %vm671, %v1586, %v1585
  %1588 = vrot.lane.b32.xlu0 %v1587, 32
  %v1589 = vpop.permute.xlu0 %1588
  %1591 = vst.msk [vmem:[#allocation2 + $0x10] sm:$0xff] %vm1440, %v1589
  %v1592 = vrot.slane %v1384, 2
  %v1593 = vrot.slane %v1386, 1
  %v1594 = vsel %vm659, %v1593, %v1592
  %v1595 = vsel %vm661, %v1388, %v1594
  %v1596 = vrot.slane %v1390, 7
  %v1597 = vsel %vm663, %v1596, %v1595
  %v1598 = vrot.slane %v1392, 6
  %v1599 = vsel %vm665, %v1598, %v1597
  %v1600 = vrot.slane %v1394, 5
  %v1601 = vsel %vm667, %v1600, %v1599
  %v1602 = vrot.slane %v1396, 4
  %v1603 = vsel %vm669, %v1602, %v1601
  %v1604 = vrot.slane %v1398, 3
  %v1605 = vsel %vm671, %v1604, %v1603
  %1606 = vrot.lane.b32.xlu0 %v1605, 64
  %v1607 = vpop.permute.xlu0 %1606
  %1609 = vst.msk [vmem:[#allocation2 + $0x10] sm:$0xff] %vm1459, %v1607
  %v1610 = vrot.slane %v1384, 3
  %v1611 = vrot.slane %v1386, 2
  %v1612 = vsel %vm659, %v1611, %v1610
  %v1613 = vrot.slane %v1388, 1
  %v1614 = vsel %vm661, %v1613, %v1612
  %v1615 = vsel %vm663, %v1390, %v1614
  %v1616 = vrot.slane %v1392, 7
  %v1617 = vsel %vm665, %v1616, %v1615
  %v1618 = vrot.slane %v1394, 6
  %v1619 = vsel %vm667, %v1618, %v1617
  %v1620 = vrot.slane %v1396, 5
  %v1621 = vsel %vm669, %v1620, %v1619
  %v1622 = vrot.slane %v1398, 4
  %v1623 = vsel %vm671, %v1622, %v1621
  %1624 = vrot.lane.b32.xlu0 %v1623, 96
  %v1625 = vpop.permute.xlu0 %1624
  %1627 = vst.msk [vmem:[#allocation2 + $0x10] sm:$0xff] %vm1478, %v1625
  %v1628 = vrot.slane %v1384, 4
  %v1629 = vrot.slane %v1386, 3
  %v1630 = vsel %vm659, %v1629, %v1628
  %v1631 = vrot.slane %v1388, 2
  %v1632 = vsel %vm661, %v1631, %v1630
  %v1633 = vrot.slane %v1390, 1
  %v1634 = vsel %vm663, %v1633, %v1632
  %v1635 = vsel %vm665, %v1392, %v1634
  %v1636 = vrot.slane %v1394, 7
  %v1637 = vsel %vm667, %v1636, %v1635
  %v1638 = vrot.slane %v1396, 6
  %v1639 = vsel %vm669, %v1638, %v1637
  %v1640 = vrot.slane %v1398, 5
  %v1641 = vsel %vm671, %v1640, %v1639
  %1643 = vst.msk [vmem:[#allocation2 + $0x18] sm:$0xff] %vm248, %v1641
  %v1644 = vrot.slane %v1384, 5
  %v1645 = vrot.slane %v1386, 4
  %v1646 = vsel %vm659, %v1645, %v1644
  %v1647 = vrot.slane %v1388, 3
  %v1648 = vsel %vm661, %v1647, %v1646
  %v1649 = vrot.slane %v1390, 2
  %v1650 = vsel %vm663, %v1649, %v1648
  %v1651 = vrot.slane %v1392, 1
  %v1652 = vsel %vm665, %v1651, %v1650
  %v1653 = vsel %vm667, %v1394, %v1652
  %v1654 = vrot.slane %v1396, 7
  %v1655 = vsel %vm669, %v1654, %v1653
  %v1656 = vrot.slane %v1398, 6
  %v1657 = vsel %vm671, %v1656, %v1655
  %1658 = vrot.lane.b32.xlu0 %v1657, 32
  %v1659 = vpop.permute.xlu0 %1658
  %1661 = vst.msk [vmem:[#allocation2 + $0x18] sm:$0xff] %vm1440, %v1659
  %v1662 = vrot.slane %v1384, 6
  %v1663 = vrot.slane %v1386, 5
  %v1664 = vsel %vm659, %v1663, %v1662
  %v1665 = vrot.slane %v1388, 4
  %v1666 = vsel %vm661, %v1665, %v1664
  %v1667 = vrot.slane %v1390, 3
  %v1668 = vsel %vm663, %v1667, %v1666
  %v1669 = vrot.slane %v1392, 2
  %v1670 = vsel %vm665, %v1669, %v1668
  %v1671 = vrot.slane %v1394, 1
  %v1672 = vsel %vm667, %v1671, %v1670
  %v1673 = vsel %vm669, %v1396, %v1672
  %v1674 = vrot.slane %v1398, 7
  %v1675 = vsel %vm671, %v1674, %v1673
  %1676 = vrot.lane.b32.xlu0 %v1675, 64
  %v1677 = vpop.permute.xlu0 %1676
  %1679 = vst.msk [vmem:[#allocation2 + $0x18] sm:$0xff] %vm1459, %v1677
  %v1680 = vrot.slane %v1384, 7
  %v1681 = vrot.slane %v1386, 6
  %v1682 = vsel %vm659, %v1681, %v1680
  %v1683 = vrot.slane %v1388, 5
  %v1684 = vsel %vm661, %v1683, %v1682
  %v1685 = vrot.slane %v1390, 4
  %v1686 = vsel %vm663, %v1685, %v1684
  %v1687 = vrot.slane %v1392, 3
  %v1688 = vsel %vm665, %v1687, %v1686
  %v1689 = vrot.slane %v1394, 2
  %v1690 = vsel %vm667, %v1689, %v1688
  %v1691 = vrot.slane %v1396, 1
  %v1692 = vsel %vm669, %v1691, %v1690
  %v1693 = vsel %vm671, %v1398, %v1692
  %1694 = vrot.lane.b32.xlu0 %v1693, 96
  %v1695 = vpop.permute.xlu0 %1694
  %1697 = vst.msk [vmem:[#allocation2 + $0x18] sm:$0xff] %vm1478, %v1695
  %v1698 = vld [vmem:[#allocation2] sm:$0xff]
  %v1699 = vld [vmem:[#allocation2 + $0x8] sm:$0xff]
  %v1700 = vld [vmem:[#allocation2 + $0x10] sm:$0xff]
  %v1701 = vld [vmem:[#allocation2 + $0x18] sm:$0xff]
  %v1702 = vpack.c.bf16 %v1698, %v1698
  %v1703 = vpack.c.bf16 %v1699, %v1699
  %v1704 = vpack.c.bf16 %v1700, %v1700
  %v1705 = vpack.c.bf16 %v1701, %v1701
  %v1706 = vld [vmem:[%s6] sm:$0xf]
  %v1707 = vld [vmem:[%s6 + $0x4] sm:$0xf]
  %v1708 = vld [vmem:[%s6 + $0x8] sm:$0xf]
  %v1709 = vld [vmem:[%s6 + $0xc] sm:$0xf]
  %v1710 = vld [vmem:[%s6 + $0x10] sm:$0xf]
  %v1711 = vld [vmem:[%s6 + $0x14] sm:$0xf]
  %v1712 = vld [vmem:[%s6 + $0x18] sm:$0xf]
  %v1713 = vld [vmem:[%s6 + $0x1c] sm:$0xf]
  %v1714 = vld [vmem:[%s6 + $0x20] sm:$0xf]
  %v1715 = vld [vmem:[%s6 + $0x24] sm:$0xf]
  %v1716 = vld [vmem:[%s6 + $0x28] sm:$0xf]
  %v1717 = vld [vmem:[%s6 + $0x2c] sm:$0xf]
  %v1718 = vld [vmem:[%s6 + $0x30] sm:$0xf]
  %v1719 = vld [vmem:[%s6 + $0x34] sm:$0xf]
  %v1720 = vld [vmem:[%s6 + $0x38] sm:$0xf]
  %v1721 = vld [vmem:[%s6 + $0x3c] sm:$0xf]
  %v1722 = vld [vmem:[%s6 + $0x40] sm:$0xf]
  %v1723 = vld [vmem:[%s6 + $0x44] sm:$0xf]
  %v1724 = vld [vmem:[%s6 + $0x48] sm:$0xf]
  %v1725 = vld [vmem:[%s6 + $0x4c] sm:$0xf]
  %v1726 = vld [vmem:[%s6 + $0x50] sm:$0xf]
  %v1727 = vld [vmem:[%s6 + $0x54] sm:$0xf]
  %v1728 = vld [vmem:[%s6 + $0x58] sm:$0xf]
  %v1729 = vld [vmem:[%s6 + $0x5c] sm:$0xf]
  %v1730 = vld [vmem:[%s6 + $0x60] sm:$0xf]
  %v1731 = vld [vmem:[%s6 + $0x64] sm:$0xf]
  %v1732 = vld [vmem:[%s6 + $0x68] sm:$0xf]
  %v1733 = vld [vmem:[%s6 + $0x6c] sm:$0xf]
  %v1734 = vld [vmem:[%s6 + $0x70] sm:$0xf]
  %v1735 = vld [vmem:[%s6 + $0x74] sm:$0xf]
  %v1736 = vld [vmem:[%s6 + $0x78] sm:$0xf]
  %v1737 = vld [vmem:[%s6 + $0x7c] sm:$0xf]
  %v1738 = vld [vmem:[%s6 + $0x80] sm:$0xf]
  %v1739 = vld [vmem:[%s6 + $0x84] sm:$0xf]
  %v1740 = vld [vmem:[%s6 + $0x88] sm:$0xf]
  %v1741 = vld [vmem:[%s6 + $0x8c] sm:$0xf]
  %v1742 = vld [vmem:[%s6 + $0x90] sm:$0xf]
  %v1743 = vld [vmem:[%s6 + $0x94] sm:$0xf]
  %v1744 = vld [vmem:[%s6 + $0x98] sm:$0xf]
  %v1745 = vld [vmem:[%s6 + $0x9c] sm:$0xf]
  %v1746 = vld [vmem:[%s6 + $0xa0] sm:$0xf]
  %v1747 = vld [vmem:[%s6 + $0xa4] sm:$0xf]
  %v1748 = vld [vmem:[%s6 + $0xa8] sm:$0xf]
  %v1749 = vld [vmem:[%s6 + $0xac] sm:$0xf]
  %v1750 = vld [vmem:[%s6 + $0xb0] sm:$0xf]
  %v1751 = vld [vmem:[%s6 + $0xb4] sm:$0xf]
  %v1752 = vld [vmem:[%s6 + $0xb8] sm:$0xf]
  %v1753 = vld [vmem:[%s6 + $0xbc] sm:$0xf]
  %v1754 = vld [vmem:[%s6 + $0xc0] sm:$0xf]
  %v1755 = vld [vmem:[%s6 + $0xc4] sm:$0xf]
  %v1756 = vld [vmem:[%s6 + $0xc8] sm:$0xf]
  %v1757 = vld [vmem:[%s6 + $0xcc] sm:$0xf]
  %v1758 = vld [vmem:[%s6 + $0xd0] sm:$0xf]
  %v1759 = vld [vmem:[%s6 + $0xd4] sm:$0xf]
  %v1760 = vld [vmem:[%s6 + $0xd8] sm:$0xf]
  %v1761 = vld [vmem:[%s6 + $0xdc] sm:$0xf]
  %v1762 = vld [vmem:[%s6 + $0xe0] sm:$0xf]
  %v1763 = vld [vmem:[%s6 + $0xe4] sm:$0xf]
  %v1764 = vld [vmem:[%s6 + $0xe8] sm:$0xf]
  %v1765 = vld [vmem:[%s6 + $0xec] sm:$0xf]
  %v1766 = vld [vmem:[%s6 + $0xf0] sm:$0xf]
  %v1767 = vld [vmem:[%s6 + $0xf4] sm:$0xf]
  %v1768 = vld [vmem:[%s6 + $0xf8] sm:$0xf]
  %v1769 = vld [vmem:[%s6 + $0xfc] sm:$0xf]
  %v1770 = vlaneseq
  %v1771 = vshrl.u32 %v1770, 7
  %v1772 = vsub.s32 3, %v1771
  %v1773 = vrot.slane %v33, %v1772
  %v1838 = vunpack.c.l.b16 %v1706
  %v1839 = vunpack.c.l.b16 %v1707
  %v1840 = vunpack.c.l.b16 %v1708
  %v1841 = vunpack.c.l.b16 %v1709
  %v1842 = vunpack.c.l.b16 %v1710
  %v1843 = vunpack.c.l.b16 %v1711
  %v1844 = vunpack.c.l.b16 %v1712
  %v1845 = vunpack.c.l.b16 %v1713
  %v1846 = vunpack.c.l.b16 %v1714
  %v1847 = vunpack.c.l.b16 %v1715
  %v1848 = vunpack.c.l.b16 %v1716
  %v1849 = vunpack.c.l.b16 %v1717
  %v1850 = vunpack.c.l.b16 %v1718
  %v1851 = vunpack.c.l.b16 %v1719
  %v1852 = vunpack.c.l.b16 %v1720
  %v1853 = vunpack.c.l.b16 %v1721
  %v1854 = vunpack.c.l.b16 %v1722
  %v1855 = vunpack.c.l.b16 %v1723
  %v1856 = vunpack.c.l.b16 %v1724
  %v1857 = vunpack.c.l.b16 %v1725
  %v1858 = vunpack.c.l.b16 %v1726
  %v1859 = vunpack.c.l.b16 %v1727
  %v1860 = vunpack.c.l.b16 %v1728
  %v1861 = vunpack.c.l.b16 %v1729
  %v1862 = vunpack.c.l.b16 %v1730
  %v1863 = vunpack.c.l.b16 %v1731
  %v1864 = vunpack.c.l.b16 %v1732
  %v1865 = vunpack.c.l.b16 %v1733
  %v1866 = vunpack.c.l.b16 %v1734
  %v1867 = vunpack.c.l.b16 %v1735
  %v1868 = vunpack.c.l.b16 %v1736
  %v1869 = vunpack.c.l.b16 %v1737
  %v1870 = vunpack.c.l.b16 %v1738
  %v1871 = vunpack.c.l.b16 %v1739
  %v1872 = vunpack.c.l.b16 %v1740
  %v1873 = vunpack.c.l.b16 %v1741
  %v1874 = vunpack.c.l.b16 %v1742
  %v1875 = vunpack.c.l.b16 %v1743
  %v1876 = vunpack.c.l.b16 %v1744
  %v1877 = vunpack.c.l.b16 %v1745
  %v1878 = vunpack.c.l.b16 %v1746
  %v1879 = vunpack.c.l.b16 %v1747
  %v1880 = vunpack.c.l.b16 %v1748
  %v1881 = vunpack.c.l.b16 %v1749
  %v1882 = vunpack.c.l.b16 %v1750
  %v1883 = vunpack.c.l.b16 %v1751
  %v1884 = vunpack.c.l.b16 %v1752
  %v1885 = vunpack.c.l.b16 %v1753
  %v1886 = vunpack.c.l.b16 %v1754
  %v1887 = vunpack.c.l.b16 %v1755
  %v1888 = vunpack.c.l.b16 %v1756
  %v1889 = vunpack.c.l.b16 %v1757
  %v1890 = vunpack.c.l.b16 %v1758
  %v1891 = vunpack.c.l.b16 %v1759
  %v1892 = vunpack.c.l.b16 %v1760
  %v1893 = vunpack.c.l.b16 %v1761
  %v1894 = vunpack.c.l.b16 %v1762
  %v1895 = vunpack.c.l.b16 %v1763
  %v1896 = vunpack.c.l.b16 %v1764
  %v1897 = vunpack.c.l.b16 %v1765
  %v1898 = vunpack.c.l.b16 %v1766
  %v1899 = vunpack.c.l.b16 %v1767
  %v1900 = vunpack.c.l.b16 %v1768
  %v1901 = vunpack.c.l.b16 %v1769
  %v1902 = vpack.c.b16 %v1839, %v1838
  %v1903 = vpack.c.b16 %v1841, %v1840
  %v1904 = vpack.c.b16 %v1843, %v1842
  %v1905 = vpack.c.b16 %v1845, %v1844
  %v1906 = vpack.c.b16 %v1847, %v1846
  %v1907 = vpack.c.b16 %v1849, %v1848
  %v1908 = vpack.c.b16 %v1851, %v1850
  %v1909 = vpack.c.b16 %v1853, %v1852
  %v1910 = vpack.c.b16 %v1855, %v1854
  %v1911 = vpack.c.b16 %v1857, %v1856
  %v1912 = vpack.c.b16 %v1859, %v1858
  %v1913 = vpack.c.b16 %v1861, %v1860
  %v1914 = vpack.c.b16 %v1863, %v1862
  %v1915 = vpack.c.b16 %v1865, %v1864
  %v1916 = vpack.c.b16 %v1867, %v1866
  %v1917 = vpack.c.b16 %v1869, %v1868
  %v1918 = vpack.c.b16 %v1871, %v1870
  %v1919 = vpack.c.b16 %v1873, %v1872
  %v1920 = vpack.c.b16 %v1875, %v1874
  %v1921 = vpack.c.b16 %v1877, %v1876
  %v1922 = vpack.c.b16 %v1879, %v1878
  %v1923 = vpack.c.b16 %v1881, %v1880
  %v1924 = vpack.c.b16 %v1883, %v1882
  %v1925 = vpack.c.b16 %v1885, %v1884
  %v1926 = vpack.c.b16 %v1887, %v1886
  %v1927 = vpack.c.b16 %v1889, %v1888
  %v1928 = vpack.c.b16 %v1891, %v1890
  %v1929 = vpack.c.b16 %v1893, %v1892
  %v1930 = vpack.c.b16 %v1895, %v1894
  %v1931 = vpack.c.b16 %v1897, %v1896
  %v1932 = vpack.c.b16 %v1899, %v1898
  %v1933 = vpack.c.b16 %v1901, %v1900
  %1966 = vmatprep.subr.bf16.mxu0 0
  %1967 = vmatpush1.bf16.msra.mxu0 %v1909
  %1968 = vmatprep.subr.bf16.mxu0 0
  %1969 = vmatpush1.bf16.msra.mxu0 %v1908
  %1970 = vmatprep.subr.bf16.mxu0 0
  %1971 = vmatpush1.bf16.msra.mxu0 %v1907
  %1972 = vmatprep.subr.bf16.mxu0 0
  %1973 = vmatpush1.bf16.msra.mxu0 %v1906
  %1974 = vmatprep.subr.bf16.mxu0 0
  %1975 = vmatpush1.bf16.msra.mxu0 %v1905
  %1976 = vmatprep.subr.bf16.mxu0 0
  %1977 = vmatpush1.bf16.msra.mxu0 %v1904
  %1978 = vmatprep.subr.bf16.mxu0 0
  %1979 = vmatpush1.bf16.msra.mxu0 %v1903
  %1980 = vmatprep.subr.bf16.mxu0 0
  %1981 = vmatpush1.bf16.msra.mxu0 %v1902
  %1982 = vmatprep.subr.bf16.mxu0 0
  %1983 = vmatpush2.bf16.msra.mxu0 %v1917
  %1984 = vmatprep.subr.bf16.mxu0 0
  %1985 = vmatpush2.bf16.msra.mxu0 %v1916
  %1986 = vmatprep.subr.bf16.mxu0 0
  %1987 = vmatpush2.bf16.msra.mxu0 %v1915
  %1988 = vmatprep.subr.bf16.mxu0 0
  %1989 = vmatpush2.bf16.msra.mxu0 %v1914
  %1990 = vmatprep.subr.bf16.mxu0 0
  %1991 = vmatpush2.bf16.msra.mxu0 %v1913
  %1992 = vmatprep.subr.bf16.mxu0 0
  %1993 = vmatpush2.bf16.msra.mxu0 %v1912
  %1994 = vmatprep.subr.bf16.mxu0 0
  %1995 = vmatpush2.bf16.msra.mxu0 %v1911
  %1996 = vmatprep.subr.bf16.mxu0 0
  %1997 = vmatpush2.bf16.msra.mxu0 %v1910
  %1998 = vmatprep.mubr.bf16.mxu0 %v1703
  %1999 = vmatmul.mubr.bf16.gmra.mxu0 %v1702
  %v2000 = vpop.f32.mrf.mxu0
  %v2001 = vadd.f32 %v1773, %v2000
  %v2002 = vpop.f32.mrf.mxu0
  %v2003 = vpop.f32.mrf.mxu0
  %v2004 = vpop.f32.mrf.mxu0
  %2005 = vdwg.mxu0
  %2006 = vmatprep.subr.bf16.mxu0 0
  %2007 = vmatpush1.bf16.msra.mxu0 %v1925
  %2008 = vmatprep.subr.bf16.mxu0 0
  %2009 = vmatpush1.bf16.msra.mxu0 %v1924
  %2010 = vmatprep.subr.bf16.mxu0 0
  %2011 = vmatpush1.bf16.msra.mxu0 %v1923
  %2012 = vmatprep.subr.bf16.mxu0 0
  %2013 = vmatpush1.bf16.msra.mxu0 %v1922
  %2014 = vmatprep.subr.bf16.mxu0 0
  %2015 = vmatpush1.bf16.msra.mxu0 %v1921
  %2016 = vmatprep.subr.bf16.mxu0 0
  %2017 = vmatpush1.bf16.msra.mxu0 %v1920
  %2018 = vmatprep.subr.bf16.mxu0 0
  %2019 = vmatpush1.bf16.msra.mxu0 %v1919
  %2020 = vmatprep.subr.bf16.mxu0 0
  %2021 = vmatpush1.bf16.msra.mxu0 %v1918
  %2022 = vmatprep.subr.bf16.mxu0 0
  %2023 = vmatpush2.bf16.msra.mxu0 %v1933
  %2024 = vmatprep.subr.bf16.mxu0 0
  %2025 = vmatpush2.bf16.msra.mxu0 %v1932
  %2026 = vmatprep.subr.bf16.mxu0 0
  %2027 = vmatpush2.bf16.msra.mxu0 %v1931
  %2028 = vmatprep.subr.bf16.mxu0 0
  %2029 = vmatpush2.bf16.msra.mxu0 %v1930
  %2030 = vmatprep.subr.bf16.mxu0 0
  %2031 = vmatpush2.bf16.msra.mxu0 %v1929
  %2032 = vmatprep.subr.bf16.mxu0 0
  %2033 = vmatpush2.bf16.msra.mxu0 %v1928
  %2034 = vmatprep.subr.bf16.mxu0 0
  %2035 = vmatpush2.bf16.msra.mxu0 %v1927
  %2036 = vmatprep.subr.bf16.mxu0 0
  %2037 = vmatpush2.bf16.msra.mxu0 %v1926
  %2038 = vmatprep.mubr.bf16.mxu0 %v1705
  %2039 = vmatmul.mubr.bf16.gmra.mxu0 %v1704
  %v2040 = vpop.f32.mrf.mxu0
  %v2041 = vadd.f32 %v2001, %v2040
  %v2042 = vpop.f32.mrf.mxu0
  %v2043 = vpop.f32.mrf.mxu0
  %v2044 = vpop.f32.mrf.mxu0
  %2045 = vdwg.mxu0
  %v2046 = vmax.f32 %v2041, 0.0
  %v2047 = vpack.c.bf16 %v2046, %v2046
  %v2048 = vld [vmem:[%s7] sm:$0xf]
  %v2049 = vld [vmem:[%s7 + $0x4] sm:$0xf]
  %v2050 = vld [vmem:[%s7 + $0x8] sm:$0xf]
  %v2051 = vld [vmem:[%s7 + $0xc] sm:$0xf]
  %v2052 = vld [vmem:[%s7 + $0x10] sm:$0xf]
  %v2053 = vld [vmem:[%s7 + $0x14] sm:$0xf]
  %v2054 = vld [vmem:[%s7 + $0x18] sm:$0xf]
  %v2055 = vld [vmem:[%s7 + $0x1c] sm:$0xf]
  %v2056 = vld [vmem:[%s7 + $0x20] sm:$0xf]
  %v2057 = vld [vmem:[%s7 + $0x24] sm:$0xf]
  %v2058 = vld [vmem:[%s7 + $0x28] sm:$0xf]
  %v2059 = vld [vmem:[%s7 + $0x2c] sm:$0xf]
  %v2060 = vld [vmem:[%s7 + $0x30] sm:$0xf]
  %v2061 = vld [vmem:[%s7 + $0x34] sm:$0xf]
  %v2062 = vld [vmem:[%s7 + $0x38] sm:$0xf]
  %v2063 = vld [vmem:[%s7 + $0x3c] sm:$0xf]
  %v2064 = vlaneseq
  %v2065 = vshrl.u32 %v2064, 7
  %v2066 = vsub.s32 4, %v2065
  %v2067 = vrot.slane %v33, %v2066
  %v2084 = vunpack.c.l.b16 %v2048
  %v2085 = vunpack.c.l.b16 %v2049
  %v2086 = vunpack.c.l.b16 %v2050
  %v2087 = vunpack.c.l.b16 %v2051
  %v2088 = vunpack.c.l.b16 %v2052
  %v2089 = vunpack.c.l.b16 %v2053
  %v2090 = vunpack.c.l.b16 %v2054
  %v2091 = vunpack.c.l.b16 %v2055
  %v2092 = vunpack.c.l.b16 %v2056
  %v2093 = vunpack.c.l.b16 %v2057
  %v2094 = vunpack.c.l.b16 %v2058
  %v2095 = vunpack.c.l.b16 %v2059
  %v2096 = vunpack.c.l.b16 %v2060
  %v2097 = vunpack.c.l.b16 %v2061
  %v2098 = vunpack.c.l.b16 %v2062
  %v2099 = vunpack.c.l.b16 %v2063
  %v2100 = vpack.c.b16 %v2085, %v2084
  %v2101 = vpack.c.b16 %v2087, %v2086
  %v2102 = vpack.c.b16 %v2089, %v2088
  %v2103 = vpack.c.b16 %v2091, %v2090
  %v2104 = vpack.c.b16 %v2093, %v2092
  %v2105 = vpack.c.b16 %v2095, %v2094
  %v2106 = vpack.c.b16 %v2097, %v2096
  %v2107 = vpack.c.b16 %v2099, %v2098
  %2116 = vmatprep.subr.bf16.mxu0 0
  %2117 = vmatpush1.bf16.msra.mxu0 %v2107
  %2118 = vmatprep.subr.bf16.mxu0 0
  %2119 = vmatpush1.bf16.msra.mxu0 %v2106
  %2120 = vmatprep.subr.bf16.mxu0 0
  %2121 = vmatpush1.bf16.msra.mxu0 %v2105
  %2122 = vmatprep.subr.bf16.mxu0 0
  %2123 = vmatpush1.bf16.msra.mxu0 %v2104
  %2124 = vmatprep.subr.bf16.mxu0 0
  %2125 = vmatpush1.bf16.msra.mxu0 %v2103
  %2126 = vmatprep.subr.bf16.mxu0 0
  %2127 = vmatpush1.bf16.msra.mxu0 %v2102
  %2128 = vmatprep.subr.bf16.mxu0 0
  %2129 = vmatpush1.bf16.msra.mxu0 %v2101
  %2130 = vmatprep.subr.bf16.mxu0 0
  %2131 = vmatpush1.bf16.msra.mxu0 %v2100
  %2132 = vmatprep.subr.bf16.mxu0 0
  %2133 = vmatpush2.bf16.msra.mxu0 0
  %2134 = vmatprep.subr.bf16.mxu0 0
  %2135 = vmatpush2.bf16.msra.mxu0 0
  %2136 = vmatprep.subr.bf16.mxu0 0
  %2137 = vmatpush2.bf16.msra.mxu0 0
  %2138 = vmatprep.subr.bf16.mxu0 0
  %2139 = vmatpush2.bf16.msra.mxu0 0
  %2140 = vmatprep.subr.bf16.mxu0 0
  %2141 = vmatpush2.bf16.msra.mxu0 0
  %2142 = vmatprep.subr.bf16.mxu0 0
  %2143 = vmatpush2.bf16.msra.mxu0 0
  %2144 = vmatprep.subr.bf16.mxu0 0
  %2145 = vmatpush2.bf16.msra.mxu0 0
  %2146 = vmatprep.subr.bf16.mxu0 0
  %2147 = vmatpush2.bf16.msra.mxu0 0
  %2148 = vmatprep.mubr.bf16.mxu0 0
  %2149 = vmatmul.mubr.bf16.gmra.mxu0 %v2047
  %v2150 = vpop.f32.mrf.mxu0
  %v2151 = vadd.f32 %v2067, %v2150
  %v2152 = vpop.f32.mrf.mxu0
  %v2153 = vpop.f32.mrf.mxu0
  %v2154 = vpop.f32.mrf.mxu0
  %2155 = vdwg.mxu0
  %v2156 = vmax.f32 %v2151, 0.0
  %v2157 = vpack.c.bf16 %v2156, %v2156
  %v2158 = vld [vmem:[%s8] sm:$0xf]
  %v2159 = vld [vmem:[%s8 + $0x4] sm:$0xf]
  %v2160 = vld [vmem:[%s8 + $0x8] sm:$0xf]
  %v2161 = vld [vmem:[%s8 + $0xc] sm:$0xf]
  %v2162 = vld [vmem:[%s8 + $0x10] sm:$0xf]
  %v2163 = vld [vmem:[%s8 + $0x14] sm:$0xf]
  %v2164 = vld [vmem:[%s8 + $0x18] sm:$0xf]
  %v2165 = vld [vmem:[%s8 + $0x1c] sm:$0xf]
  %v2166 = vlaneseq
  %v2167 = vshrl.u32 %v2166, 7
  %v2168 = vsub.s32 5, %v2167
  %v2169 = vrot.slane %v33, %v2168
  %v2178 = vunpack.c.l.b16 %v2158
  %v2179 = vunpack.c.l.b16 %v2159
  %v2180 = vunpack.c.l.b16 %v2160
  %v2181 = vunpack.c.l.b16 %v2161
  %v2182 = vunpack.c.l.b16 %v2162
  %v2183 = vunpack.c.l.b16 %v2163
  %v2184 = vunpack.c.l.b16 %v2164
  %v2185 = vunpack.c.l.b16 %v2165
  %v2186 = vpack.c.b16 %v2179, %v2178
  %v2187 = vpack.c.b16 %v2181, %v2180
  %v2188 = vpack.c.b16 %v2183, %v2182
  %v2189 = vpack.c.b16 %v2185, %v2184
  %v2195 = vsel %vm126, %v2157, 0
  %2197 = vmatprep.subr.bf16.mxu0 0
  %2198 = vmatpush1.bf16.msra.mxu0 0
  %2199 = vmatprep.subr.bf16.mxu0 0
  %2200 = vmatpush1.bf16.msra.mxu0 0
  %2201 = vmatprep.subr.bf16.mxu0 0
  %2202 = vmatpush1.bf16.msra.mxu0 0
  %2203 = vmatprep.subr.bf16.mxu0 0
  %2204 = vmatpush1.bf16.msra.mxu0 0
  %2205 = vmatprep.subr.bf16.mxu0 0
  %2206 = vmatpush1.bf16.msra.mxu0 %v2189
  %2207 = vmatprep.subr.bf16.mxu0 0
  %2208 = vmatpush1.bf16.msra.mxu0 %v2188
  %2209 = vmatprep.subr.bf16.mxu0 0
  %2210 = vmatpush1.bf16.msra.mxu0 %v2187
  %2211 = vmatprep.subr.bf16.mxu0 0
  %2212 = vmatpush1.bf16.msra.mxu0 %v2186
  %2213 = vmatprep.subr.bf16.mxu0 0
  %2214 = vmatpush2.bf16.msra.mxu0 0
  %2215 = vmatprep.subr.bf16.mxu0 0
  %2216 = vmatpush2.bf16.msra.mxu0 0
  %2217 = vmatprep.subr.bf16.mxu0 0
  %2218 = vmatpush2.bf16.msra.mxu0 0
  %2219 = vmatprep.subr.bf16.mxu0 0
  %2220 = vmatpush2.bf16.msra.mxu0 0
  %2221 = vmatprep.subr.bf16.mxu0 0
  %2222 = vmatpush2.bf16.msra.mxu0 0
  %2223 = vmatprep.subr.bf16.mxu0 0
  %2224 = vmatpush2.bf16.msra.mxu0 0
  %2225 = vmatprep.subr.bf16.mxu0 0
  %2226 = vmatpush2.bf16.msra.mxu0 0
  %2227 = vmatprep.subr.bf16.mxu0 0
  %2228 = vmatpush2.bf16.msra.mxu0 0
  %2229 = vmatprep.mubr.bf16.mxu0 0
  %2230 = vmatmul.mubr.bf16.gmra.mxu0 %v2195
  %v2231 = vpop.f32.mrf.mxu0
  %v2232 = vadd.f32 %v2169, %v2231
  %v2233 = vpop.f32.mrf.mxu0
  %v2234 = vpop.f32.mrf.mxu0
  %v2235 = vpop.f32.mrf.mxu0
  %2236 = vdwg.mxu0
  %2237 = vst [vmem:[%s9] sm:$0xff] %v2232
  // Predicated region
  $region38: #{anetwork_forward.1} parent=0 // pred_check
    _
  $region39: #{anetwork_forward.1} parent=0 // pred_check_branch
    %2239 = sbr.rel (0) target = $region41
  $region40: #{anetwork_forward.1} parent=0 // pred_region
    _
  $region41: #{anetwork_forward.1} parent=0 // pred_fallthru
    _
  // Predicated region
  $region42: #{anetwork_forward.1} parent=0 // pred_check
    _
  $region43: #{anetwork_forward.1} parent=0 // pred_check_branch
    %2241 = sbr.rel (0) target = $region45
  $region44: #{anetwork_forward.1} parent=0 // pred_region
    _
  $region45: #{anetwork_forward.1} parent=0 // pred_fallthru
    _

</llo_original>
